<compile_context>
chip_gen: v6e
topology: v6e:2x2x1
jax: 0.10.0
libtpu: 0.0.40
codegen_flags: <defaults>
</compile_context>

<pallas_src>
import functools

import jax
import jax.numpy as jnp
from jax.experimental import pallas as pl
from jax.experimental.pallas import tpu as pltpu

LATENT_DIM = 100
LATENT_PAD = 128          # 100 -> 128: clean K for the first MXU matmul
H1, H2 = 256, 512
OUT = 784                 # 28 * 28 (block last dim == full array dim)


def _leaky_relu(x, slope=0.2):
    return jnp.where(x > 0, x, slope * x)


def _round_up(x, m):
    return ((x + m - 1) // m) * m


def generator_kernel(z_ref, w1_ref, b1_ref, w2_ref, b2_ref, w3_ref, b3_ref, o_ref):
    # z_ref: (TB, 128) bf16; weights bf16; biases f32; o_ref: (TB, 784) bf16.

    # Linear(100 -> 256) + LeakyReLU(0.2)
    h1 = jnp.dot(z_ref[...], w1_ref[...],
                 preferred_element_type=jnp.float32) + b1_ref[...]
    h1 = _leaky_relu(h1)

    # Linear(256 -> 512) + LeakyReLU(0.2)
    h2 = jnp.dot(h1.astype(jnp.bfloat16), w2_ref[...],
                 preferred_element_type=jnp.float32) + b2_ref[...]
    h2 = _leaky_relu(h2)

    # Linear(512 -> 784) + Tanh. Epilogue stays f32 (v5e has no bf16 VPU/EUP);
    # only the final store casts to the (bf16) output dtype.
    h3 = jnp.dot(h2.astype(jnp.bfloat16), w3_ref[...],
                 preferred_element_type=jnp.float32) + b3_ref[...]
    o_ref[...] = jnp.tanh(h3).astype(o_ref.dtype)


def prepare_params(params):
    """One-time weight padding / bf16 casting. Call once, reuse every forward."""
    w1, b1, w2, b2, w3, b3 = params
    # Padded w1 rows (latent 100 -> 128) are zero => contribute nothing.
    w1_p = jnp.zeros((LATENT_PAD, H1), jnp.bfloat16).at[:LATENT_DIM, :].set(
        w1.astype(jnp.bfloat16))
    w2_p = w2.astype(jnp.bfloat16)
    w3_p = w3.astype(jnp.bfloat16)
    b1_p = jnp.asarray(b1, jnp.float32).reshape(1, H1)
    b2_p = jnp.asarray(b2, jnp.float32).reshape(1, H2)
    b3_p = jnp.asarray(b3, jnp.float32).reshape(1, OUT)
    return (w1_p, b1_p, w2_p, b2_p, w3_p, b3_p)


@functools.partial(jax.jit, static_argnames=("tb",))
def generator_forward(z, prepared_params, *, tb=512):
    """z: (B, 100) float32. prepared_params from prepare_params().
    Returns generated images of shape (B, 1, 28, 28) in bfloat16."""
    w1_p, b1_p, w2_p, b2_p, w3_p, b3_p = prepared_params
    B = z.shape[0]

    # Batch tile: multiple of 16 (bf16 sublane packing); pick ~ceil(B/2) so the
    # grid has >= 2 steps when the batch allows it (v7x megacore), capped at tb.
    TB = min(tb, max(16, _round_up(pl.cdiv(B, 2), 16)))
    n_blocks = pl.cdiv(B, TB)
    B_pad = n_blocks * TB

    # Zero-pad batch -> B_pad and latent 100 -> 128 (zeros contribute nothing;
    # junk padded-batch rows are sliced off below, fused under jit).
    z_p = jnp.zeros((B_pad, LATENT_PAD), jnp.bfloat16).at[:B, :LATENT_DIM].set(
        z.astype(jnp.bfloat16))

    w_bytes = 2 * (LATENT_PAD * H1 + H1 * H2 + H2 * OUT) + 4 * (H1 + H2 + OUT)
    cost = pl.CostEstimate(
        flops=2 * B_pad * (LATENT_PAD * H1 + H1 * H2 + H2 * OUT),
        transcendentals=B_pad * OUT,
        bytes_accessed=B_pad * LATENT_PAD * 2 + w_bytes + B_pad * OUT * 2,
    )

    out = pl.pallas_call(
        generator_kernel,
        out_shape=jax.ShapeDtypeStruct((B_pad, OUT), jnp.bfloat16),
        grid=(n_blocks,),
        in_specs=[
            pl.BlockSpec((TB, LATENT_PAD), lambda i: (i, 0)),   # z: tiled over batch
            pl.BlockSpec((LATENT_PAD, H1), lambda i: (0, 0)),   # weights / biases:
            pl.BlockSpec((1, H1),          lambda i: (0, 0)),   # constant index_map
            pl.BlockSpec((H1, H2),         lambda i: (0, 0)),   # -> DMA'd once,
            pl.BlockSpec((1, H2),          lambda i: (0, 0)),   #    VMEM-resident
            pl.BlockSpec((H2, OUT),        lambda i: (0, 0)),   #    across steps
            pl.BlockSpec((1, OUT),         lambda i: (0, 0)),
        ],
        out_specs=pl.BlockSpec((TB, OUT), lambda i: (i, 0)),
        compiler_params=pltpu.CompilerParams(
            dimension_semantics=("parallel",),
        ),
        cost_estimate=cost,
    )(z_p, w1_p, b1_p, w2_p, b2_p, w3_p, b3_p)

    return out[:B].reshape(B, 1, 28, 28)


def init_params(key):
    """Deterministic init matching the nn.Linear shapes (stored transposed:
    (in_features, out_features)), U(-1/sqrt(fan_in), 1/sqrt(fan_in))."""
    k1, k2, k3, k4, k5, k6 = jax.random.split(key, 6)

    def lin(kw, kb, fan_in, fan_out):
        bound = 1.0 / jnp.sqrt(jnp.float32(fan_in))
        w = jax.random.uniform(kw, (fan_in, fan_out), jnp.float32, -bound, bound)
        b = jax.random.uniform(kb, (1, fan_out), jnp.float32, -bound, bound)
        return w, b

    w1, b1 = lin(k1, k2, LATENT_DIM, H1)
    w2, b2 = lin(k3, k4, H1, H2)
    w3, b3 = lin(k5, k6, H2, OUT)
    return (w1, b1, w2, b2, w3, b3)


def _reference(z, params):
    """Pure-JAX f32 reference matching the PyTorch Generator forward."""
    w1, b1, w2, b2, w3, b3 = params
    h = _leaky_relu(z @ w1 + b1)
    h = _leaky_relu(h @ w2 + b2)
    img = jnp.tanh(h @ w3 + b3)
    return img.reshape(z.shape[0], 1, 28, 28)


if __name__ == "__main__":
    key = jax.random.PRNGKey(0)
    k_z, k_par = jax.random.split(key)

    B = 8
    z = jax.random.normal(k_z, (B, LATENT_DIM), jnp.float32)
    params = init_params(k_par)
    prepared = prepare_params(params)   # one-time weight padding / bf16 cast

    img = generator_forward(z, prepared)
    img = jax.block_until_ready(img)

    ref = _reference(z, params)
    assert img.shape == (B, 1, 28, 28), img.shape
    # MXU runs bf16 (f32 accumulation) and the output is stored bf16, so
    # compare loosely against the f32 reference.
    assert jnp.allclose(img.astype(jnp.float32), ref, atol=3e-2, rtol=3e-2), \
        "mismatch vs reference"

    print("KERNEL_OK")
</pallas_src>

<mosaic_0001>
module attributes {stable_mosaic.version = 11 : i64} {
  func.func @generator_kernel(%arg0: i32, %arg1: memref<16x128xbf16, #tpu.memory_space<vmem>>, %arg2: memref<128x256xbf16, #tpu.memory_space<vmem>>, %arg3: memref<1x256xf32, #tpu.memory_space<vmem>>, %arg4: memref<256x512xbf16, #tpu.memory_space<vmem>>, %arg5: memref<1x512xf32, #tpu.memory_space<vmem>>, %arg6: memref<512x784xbf16, #tpu.memory_space<vmem>>, %arg7: memref<1x784xf32, #tpu.memory_space<vmem>>, %arg8: memref<16x784xbf16, #tpu.memory_space<vmem>>) attributes {dimension_semantics = [#tpu.dimension_semantics<parallel>], iteration_bounds = array<i64: 1>, scalar_prefetch = 0 : i64, scratch_operands = 0 : i64, tpu.core_type = #tpu.core_type<tc>, window_params = [{transform_indices = @transform_0, window_bounds = array<i64: 16, 128>}, {pipeline_mode = #tpu.pipeline_mode<synchronous>, transform_indices = @transform_1, window_bounds = array<i64: 128, 256>}, {pipeline_mode = #tpu.pipeline_mode<synchronous>, transform_indices = @transform_2, window_bounds = array<i64: 1, 256>}, {pipeline_mode = #tpu.pipeline_mode<synchronous>, transform_indices = @transform_3, window_bounds = array<i64: 256, 512>}, {pipeline_mode = #tpu.pipeline_mode<synchronous>, transform_indices = @transform_4, window_bounds = array<i64: 1, 512>}, {pipeline_mode = #tpu.pipeline_mode<synchronous>, transform_indices = @transform_5, window_bounds = array<i64: 512, 784>}, {pipeline_mode = #tpu.pipeline_mode<synchronous>, transform_indices = @transform_6, window_bounds = array<i64: 1, 784>}, {transform_indices = @transform_7, window_bounds = array<i64: 16, 784>}]} {
    %c0 = arith.constant 0 : index
    %c0_0 = arith.constant 0 : index
    %0 = vector.load %arg1[%c0, %c0_0] : memref<16x128xbf16, #tpu.memory_space<vmem>>, vector<16x128xbf16>
    %c0_1 = arith.constant 0 : index
    %c0_2 = arith.constant 0 : index
    %1 = vector.load %arg2[%c0_1, %c0_2] : memref<128x256xbf16, #tpu.memory_space<vmem>>, vector<128x256xbf16>
    %cst = arith.constant dense<0.000000e+00> : vector<16x256xf32>
    %2 = tpu.matmul %0, %1, %cst {dimension_numbers = #tpu.dot_dimension_numbers<[1], [0], [0], [1], [0, 0, 1, 1], [], []>} : vector<16x128xbf16>, vector<128x256xbf16>, vector<16x256xf32> -> vector<16x256xf32>
    %c0_3 = arith.constant 0 : index
    %c0_4 = arith.constant 0 : index
    %3 = vector.load %arg3[%c0_3, %c0_4] : memref<1x256xf32, #tpu.memory_space<vmem>>, vector<1x256xf32>
    %4 = vector.broadcast %3 : vector<1x256xf32> to vector<16x256xf32>
    %5 = arith.addf %2, %4 : vector<16x256xf32>
    %cst_5 = arith.constant 0.000000e+00 : f32
    %6 = vector.broadcast %cst_5 : f32 to vector<16x256xf32>
    %7 = arith.cmpf ogt, %5, %6 : vector<16x256xf32>
    %cst_6 = arith.constant 2.000000e-01 : f32
    %8 = vector.broadcast %cst_6 : f32 to vector<16x256xf32>
    %9 = arith.mulf %8, %5 : vector<16x256xf32>
    %10 = arith.select %7, %5, %9 : vector<16x256xi1>, vector<16x256xf32>
    %11 = arith.truncf %10 : vector<16x256xf32> to vector<16x256xbf16>
    %c0_7 = arith.constant 0 : index
    %c0_8 = arith.constant 0 : index
    %12 = vector.load %arg4[%c0_7, %c0_8] : memref<256x512xbf16, #tpu.memory_space<vmem>>, vector<256x512xbf16>
    %cst_9 = arith.constant dense<0.000000e+00> : vector<16x512xf32>
    %13 = tpu.matmul %11, %12, %cst_9 {dimension_numbers = #tpu.dot_dimension_numbers<[1], [0], [0], [1], [0, 0, 1, 1], [], []>} : vector<16x256xbf16>, vector<256x512xbf16>, vector<16x512xf32> -> vector<16x512xf32>
    %c0_10 = arith.constant 0 : index
    %c0_11 = arith.constant 0 : index
    %14 = vector.load %arg5[%c0_10, %c0_11] : memref<1x512xf32, #tpu.memory_space<vmem>>, vector<1x512xf32>
    %15 = vector.broadcast %14 : vector<1x512xf32> to vector<16x512xf32>
    %16 = arith.addf %13, %15 : vector<16x512xf32>
    %cst_12 = arith.constant 0.000000e+00 : f32
    %17 = vector.broadcast %cst_12 : f32 to vector<16x512xf32>
    %18 = arith.cmpf ogt, %16, %17 : vector<16x512xf32>
    %cst_13 = arith.constant 2.000000e-01 : f32
    %19 = vector.broadcast %cst_13 : f32 to vector<16x512xf32>
    %20 = arith.mulf %19, %16 : vector<16x512xf32>
    %21 = arith.select %18, %16, %20 : vector<16x512xi1>, vector<16x512xf32>
    %22 = arith.truncf %21 : vector<16x512xf32> to vector<16x512xbf16>
    %c0_14 = arith.constant 0 : index
    %c0_15 = arith.constant 0 : index
    %23 = vector.load %arg6[%c0_14, %c0_15] : memref<512x784xbf16, #tpu.memory_space<vmem>>, vector<512x784xbf16>
    %cst_16 = arith.constant dense<0.000000e+00> : vector<16x784xf32>
    %24 = tpu.matmul %22, %23, %cst_16 {dimension_numbers = #tpu.dot_dimension_numbers<[1], [0], [0], [1], [0, 0, 1, 1], [], []>} : vector<16x512xbf16>, vector<512x784xbf16>, vector<16x784xf32> -> vector<16x784xf32>
    %c0_17 = arith.constant 0 : index
    %c0_18 = arith.constant 0 : index
    %25 = vector.load %arg7[%c0_17, %c0_18] : memref<1x784xf32, #tpu.memory_space<vmem>>, vector<1x784xf32>
    %26 = vector.broadcast %25 : vector<1x784xf32> to vector<16x784xf32>
    %27 = arith.addf %24, %26 : vector<16x784xf32>
    %28 = math.tanh %27 : vector<16x784xf32>
    %29 = arith.truncf %28 : vector<16x784xf32> to vector<16x784xbf16>
    %c0_19 = arith.constant 0 : index
    %c0_20 = arith.constant 0 : index
    %30 = vector.load %arg8[%c0_19, %c0_20] : memref<16x784xbf16, #tpu.memory_space<vmem>>, vector<16x784xbf16>
    tpu.vector_store %arg8[%c0_19, %c0_20], %29 {strides = array<i32>} : memref<16x784xbf16, #tpu.memory_space<vmem>>, vector<16x784xbf16>,
    return
  }
  func.func @transform_0(%arg0: i32) -> (i32, i32) {
    %c0_i32 = arith.constant 0 : i32
    %c0_i32_0 = arith.constant 0 : i32
    return %arg0, %c0_i32 : i32, i32
  }
  func.func @transform_1(%arg0: i32) -> (i32, i32) {
    %c0_i32 = arith.constant 0 : i32
    %c0_i32_0 = arith.constant 0 : i32
    %c0_i32_1 = arith.constant 0 : i32
    return %c0_i32, %c0_i32_0 : i32, i32
  }
  func.func @transform_2(%arg0: i32) -> (i32, i32) {
    %c0_i32 = arith.constant 0 : i32
    %c0_i32_0 = arith.constant 0 : i32
    %c0_i32_1 = arith.constant 0 : i32
    return %c0_i32, %c0_i32_0 : i32, i32
  }
  func.func @transform_3(%arg0: i32) -> (i32, i32) {
    %c0_i32 = arith.constant 0 : i32
    %c0_i32_0 = arith.constant 0 : i32
    %c0_i32_1 = arith.constant 0 : i32
    return %c0_i32, %c0_i32_0 : i32, i32
  }
  func.func @transform_4(%arg0: i32) -> (i32, i32) {
    %c0_i32 = arith.constant 0 : i32
    %c0_i32_0 = arith.constant 0 : i32
    %c0_i32_1 = arith.constant 0 : i32
    return %c0_i32, %c0_i32_0 : i32, i32
  }
  func.func @transform_5(%arg0: i32) -> (i32, i32) {
    %c0_i32 = arith.constant 0 : i32
    %c0_i32_0 = arith.constant 0 : i32
    %c0_i32_1 = arith.constant 0 : i32
    return %c0_i32, %c0_i32_0 : i32, i32
  }
  func.func @transform_6(%arg0: i32) -> (i32, i32) {
    %c0_i32 = arith.constant 0 : i32
    %c0_i32_0 = arith.constant 0 : i32
    %c0_i32_1 = arith.constant 0 : i32
    return %c0_i32, %c0_i32_0 : i32, i32
  }
  func.func @transform_7(%arg0: i32) -> (i32, i32) {
    %c0_i32 = arith.constant 0 : i32
    %c0_i32_0 = arith.constant 0 : i32
    return %arg0, %c0_i32 : i32, i32
  }
}

</mosaic_0001>

<llo_original>
// kernel: generator_forward.1
$region0: #{generator_forward.1}
  #allocation0 [shape = 'u32[]', space=smem, size = 0x4, offset = 0x4, fixed_abs, tag = 'smem constant byte address 0x4 - core index']
  #allocation1 [shape = 'u32[144,128]{1,0:T(1,128)}', space=vmem, size = 0x12000, scoped, tag = 'internal scratch']
  %s0 = inlined_call_operand.vmem [shape: bf16[16,128], index: 0, kind: input, shape index: {}]
  %s1 = inlined_call_operand.vmem [shape: bf16[128,256], index: 1, kind: input, shape index: {}]
  %s2 = inlined_call_operand.vmem [shape: f32[1,256], index: 2, kind: input, shape index: {}]
  %s3 = inlined_call_operand.vmem [shape: bf16[256,512], index: 3, kind: input, shape index: {}]
  %s4 = inlined_call_operand.vmem [shape: f32[1,512], index: 4, kind: input, shape index: {}]
  %s5 = inlined_call_operand.vmem [shape: bf16[512,784], index: 5, kind: input, shape index: {}]
  %s6 = inlined_call_operand.vmem [shape: f32[1,784], index: 6, kind: input, shape index: {}]
  %s7 = inlined_call_operand.vmem [shape: bf16[16,784], index: 7, kind: output, shape index: {}]
  %s8 = sld [smem:[#allocation0]]
  $region38: #{generator_forward.1} parent=0
    _
  %s10 = ssub.s32 1, %s8
  %s11 = scalar_select 0, %s10, %s8
  // Predicated region
  $region2: #{generator_forward.1} parent=0 // pred_check
    _
  $region3: #{generator_forward.1} parent=0 // pred_check_branch
    %13 = sbr.rel (0) target = $region5
  $region4: #{generator_forward.1} parent=0 // pred_region
    _
  $region5: #{generator_forward.1} parent=0 // pred_fallthru
    _
  // Predicated region
  $region6: #{generator_forward.1} parent=0 // pred_check
    _
  $region7: #{generator_forward.1} parent=0 // pred_check_branch
    %15 = sbr.rel (0) target = $region9
  $region8: #{generator_forward.1} parent=0 // pred_region
    _
  $region9: #{generator_forward.1} parent=0 // pred_fallthru
    _
  // Predicated region
  $region10: #{generator_forward.1} parent=0 // pred_check
    _
  $region11: #{generator_forward.1} parent=0 // pred_check_branch
    %17 = sbr.rel (0) target = $region13
  $region12: #{generator_forward.1} parent=0 // pred_region
    _
  $region13: #{generator_forward.1} parent=0 // pred_fallthru
    _
  // Predicated region
  $region14: #{generator_forward.1} parent=0 // pred_check
    _
  $region15: #{generator_forward.1} parent=0 // pred_check_branch
    %19 = sbr.rel (0) target = $region17
  $region16: #{generator_forward.1} parent=0 // pred_region
    _
  $region17: #{generator_forward.1} parent=0 // pred_fallthru
    _
  // Predicated region
  $region18: #{generator_forward.1} parent=0 // pred_check
    _
  $region19: #{generator_forward.1} parent=0 // pred_check_branch
    %21 = sbr.rel (0) target = $region21
  $region20: #{generator_forward.1} parent=0 // pred_region
    _
  $region21: #{generator_forward.1} parent=0 // pred_fallthru
    _
  // Predicated region
  $region22: #{generator_forward.1} parent=0 // pred_check
    _
  $region23: #{generator_forward.1} parent=0 // pred_check_branch
    %23 = sbr.rel (0) target = $region25
  $region24: #{generator_forward.1} parent=0 // pred_region
    _
  $region25: #{generator_forward.1} parent=0 // pred_fallthru
    _
  // Predicated region
  $region26: #{generator_forward.1} parent=0 // pred_check
    _
  $region27: #{generator_forward.1} parent=0 // pred_check_branch
    %25 = sbr.rel (0) target = $region29
  $region28: #{generator_forward.1} parent=0 // pred_region
    _
  $region29: #{generator_forward.1} parent=0 // pred_fallthru
    _
  %v27 = vld [vmem:[%s0] sm:$0xf]
  %v28 = vld [vmem:[%s0 + $0x4] sm:$0xf]
  %v29 = vld [vmem:[%s1] sm:$0xff]
  %v30 = vld [vmem:[%s1 + $0x8] sm:$0xff]
  %v31 = vld [vmem:[%s1 + $0x10] sm:$0xff]
  %v32 = vld [vmem:[%s1 + $0x18] sm:$0xff]
  %v33 = vld [vmem:[%s1 + $0x20] sm:$0xff]
  %v34 = vld [vmem:[%s1 + $0x28] sm:$0xff]
  %v35 = vld [vmem:[%s1 + $0x30] sm:$0xff]
  %v36 = vld [vmem:[%s1 + $0x38] sm:$0xff]
  %v37 = vld [vmem:[%s1 + $0x40] sm:$0xff]
  %v38 = vld [vmem:[%s1 + $0x48] sm:$0xff]
  %v39 = vld [vmem:[%s1 + $0x50] sm:$0xff]
  %v40 = vld [vmem:[%s1 + $0x58] sm:$0xff]
  %v41 = vld [vmem:[%s1 + $0x60] sm:$0xff]
  %v42 = vld [vmem:[%s1 + $0x68] sm:$0xff]
  %v43 = vld [vmem:[%s1 + $0x70] sm:$0xff]
  %v44 = vld [vmem:[%s1 + $0x78] sm:$0xff]
  %v45 = vld [vmem:[%s2] sm:$0x3]
  %v47 = vlaneseq
  %v48 = vshrl.u32 %v47, 7
  %v49 = vsub.s32 0, %v48
  %v50 = vrot.slane %v45, %v49
  %v51 = vlaneseq
  %v52 = vshrl.u32 %v51, 7
  %v53 = vsub.s32 1, %v52
  %v54 = vrot.slane %v45, %v53
  %v59 = vunpack.c.l.b16 %v27
  %v60 = vunpack.c.l.b16 %v28
  %v61 = vpack.c.b16 %v60, %v59
  %v79 = vunpack.c.l.b16 %v29
  %v80 = vunpack.c.h.b16 %v29
  %v81 = vunpack.c.l.b16 %v30
  %v82 = vunpack.c.h.b16 %v30
  %v83 = vunpack.c.l.b16 %v31
  %v84 = vunpack.c.h.b16 %v31
  %v85 = vunpack.c.l.b16 %v32
  %v86 = vunpack.c.h.b16 %v32
  %v87 = vunpack.c.l.b16 %v33
  %v88 = vunpack.c.h.b16 %v33
  %v89 = vunpack.c.l.b16 %v34
  %v90 = vunpack.c.h.b16 %v34
  %v91 = vunpack.c.l.b16 %v35
  %v92 = vunpack.c.h.b16 %v35
  %v93 = vunpack.c.l.b16 %v36
  %v94 = vunpack.c.h.b16 %v36
  %v95 = vunpack.c.l.b16 %v37
  %v96 = vunpack.c.h.b16 %v37
  %v97 = vunpack.c.l.b16 %v38
  %v98 = vunpack.c.h.b16 %v38
  %v99 = vunpack.c.l.b16 %v39
  %v100 = vunpack.c.h.b16 %v39
  %v101 = vunpack.c.l.b16 %v40
  %v102 = vunpack.c.h.b16 %v40
  %v103 = vunpack.c.l.b16 %v41
  %v104 = vunpack.c.h.b16 %v41
  %v105 = vunpack.c.l.b16 %v42
  %v106 = vunpack.c.h.b16 %v42
  %v107 = vunpack.c.l.b16 %v43
  %v108 = vunpack.c.h.b16 %v43
  %v109 = vunpack.c.l.b16 %v44
  %v110 = vunpack.c.h.b16 %v44
  %v111 = vpack.c.b16 %v81, %v79
  %v112 = vpack.c.b16 %v82, %v80
  %v113 = vpack.c.b16 %v85, %v83
  %v114 = vpack.c.b16 %v86, %v84
  %v115 = vpack.c.b16 %v89, %v87
  %v116 = vpack.c.b16 %v90, %v88
  %v117 = vpack.c.b16 %v93, %v91
  %v118 = vpack.c.b16 %v94, %v92
  %v119 = vpack.c.b16 %v97, %v95
  %v120 = vpack.c.b16 %v98, %v96
  %v121 = vpack.c.b16 %v101, %v99
  %v122 = vpack.c.b16 %v102, %v100
  %v123 = vpack.c.b16 %v105, %v103
  %v124 = vpack.c.b16 %v106, %v104
  %v125 = vpack.c.b16 %v109, %v107
  %v126 = vpack.c.b16 %v110, %v108
  %143 = vmatprep.subr.bf16.mxu0 %v126
  %144 = vmatpush1.bf16.msra.mxu0 %v125
  %145 = vmatprep.subr.bf16.mxu0 %v124
  %146 = vmatpush1.bf16.msra.mxu0 %v123
  %147 = vmatprep.subr.bf16.mxu0 %v122
  %148 = vmatpush1.bf16.msra.mxu0 %v121
  %149 = vmatprep.subr.bf16.mxu0 %v120
  %150 = vmatpush1.bf16.msra.mxu0 %v119
  %151 = vmatprep.subr.bf16.mxu0 %v118
  %152 = vmatpush1.bf16.msra.mxu0 %v117
  %153 = vmatprep.subr.bf16.mxu0 %v116
  %154 = vmatpush1.bf16.msra.mxu0 %v115
  %155 = vmatprep.subr.bf16.mxu0 %v114
  %156 = vmatpush1.bf16.msra.mxu0 %v113
  %157 = vmatprep.subr.bf16.mxu0 %v112
  %158 = vmatpush1.bf16.msra.mxu0 %v111
  %159 = vmatprep.subr.bf16.mxu0 0
  %160 = vmatpush2.bf16.msra.mxu0 0
  %161 = vmatprep.subr.bf16.mxu0 0
  %162 = vmatpush2.bf16.msra.mxu0 0
  %163 = vmatprep.subr.bf16.mxu0 0
  %164 = vmatpush2.bf16.msra.mxu0 0
  %165 = vmatprep.subr.bf16.mxu0 0
  %166 = vmatpush2.bf16.msra.mxu0 0
  %167 = vmatprep.subr.bf16.mxu0 0
  %168 = vmatpush2.bf16.msra.mxu0 0
  %169 = vmatprep.subr.bf16.mxu0 0
  %170 = vmatpush2.bf16.msra.mxu0 0
  %171 = vmatprep.subr.bf16.mxu0 0
  %172 = vmatpush2.bf16.msra.mxu0 0
  %173 = vmatprep.subr.bf16.mxu0 0
  %174 = vmatpush2.bf16.msra.mxu0 0
  %175 = vmatprep.mubr.bf16.mxu0 0
  %176 = vmatmul.mubr.bf16.gmra.mxu0 %v61
  %v177 = vpop.f32.mrf.mxu0
  %v178 = vadd.f32 %v50, %v177
  %v179 = vpop.f32.mrf.mxu0
  %v180 = vadd.f32 %v54, %v179
  %v181 = vpop.f32.mrf.mxu0
  %v182 = vadd.f32 %v50, %v181
  %v183 = vpop.f32.mrf.mxu0
  %v184 = vadd.f32 %v54, %v183
  %185 = vdwg.mxu0
  %vm186 = vcmp.gt.f32.partialorder %v178, 0.0
  %vm187 = vcmp.gt.f32.partialorder %v180, 0.0
  %vm188 = vcmp.gt.f32.partialorder %v182, 0.0
  %vm189 = vcmp.gt.f32.partialorder %v184, 0.0
  %v190 = vmul.f32 %v178, 0.2
  %v191 = vmul.f32 %v180, 0.2
  %v192 = vmul.f32 %v182, 0.2
  %v193 = vmul.f32 %v184, 0.2
  %v194 = vsel %vm186, %v178, %v190
  %v195 = vsel %vm187, %v180, %v191
  %v196 = vsel %vm188, %v182, %v192
  %v197 = vsel %vm189, %v184, %v193
  %v198 = vpack.c.bf16 %v196, %v194
  %v199 = vpack.c.bf16 %v197, %v195
  %v200 = vld [vmem:[%s3] sm:$0xff]
  %v201 = vld [vmem:[%s3 + $0x8] sm:$0xff]
  %v202 = vld [vmem:[%s3 + $0x10] sm:$0xff]
  %v203 = vld [vmem:[%s3 + $0x18] sm:$0xff]
  %v204 = vld [vmem:[%s3 + $0x20] sm:$0xff]
  %v205 = vld [vmem:[%s3 + $0x28] sm:$0xff]
  %v206 = vld [vmem:[%s3 + $0x30] sm:$0xff]
  %v207 = vld [vmem:[%s3 + $0x38] sm:$0xff]
  %v208 = vld [vmem:[%s3 + $0x40] sm:$0xff]
  %v209 = vld [vmem:[%s3 + $0x48] sm:$0xff]
  %v210 = vld [vmem:[%s3 + $0x50] sm:$0xff]
  %v211 = vld [vmem:[%s3 + $0x58] sm:$0xff]
  %v212 = vld [vmem:[%s3 + $0x60] sm:$0xff]
  %v213 = vld [vmem:[%s3 + $0x68] sm:$0xff]
  %v214 = vld [vmem:[%s3 + $0x70] sm:$0xff]
  %v215 = vld [vmem:[%s3 + $0x78] sm:$0xff]
  %v216 = vld [vmem:[%s3 + $0x80] sm:$0xff]
  %v217 = vld [vmem:[%s3 + $0x88] sm:$0xff]
  %v218 = vld [vmem:[%s3 + $0x90] sm:$0xff]
  %v219 = vld [vmem:[%s3 + $0x98] sm:$0xff]
  %v220 = vld [vmem:[%s3 + $0xa0] sm:$0xff]
  %v221 = vld [vmem:[%s3 + $0xa8] sm:$0xff]
  %v222 = vld [vmem:[%s3 + $0xb0] sm:$0xff]
  %v223 = vld [vmem:[%s3 + $0xb8] sm:$0xff]
  %v224 = vld [vmem:[%s3 + $0xc0] sm:$0xff]
  %v225 = vld [vmem:[%s3 + $0xc8] sm:$0xff]
  %v226 = vld [vmem:[%s3 + $0xd0] sm:$0xff]
  %v227 = vld [vmem:[%s3 + $0xd8] sm:$0xff]
  %v228 = vld [vmem:[%s3 + $0xe0] sm:$0xff]
  %v229 = vld [vmem:[%s3 + $0xe8] sm:$0xff]
  %v230 = vld [vmem:[%s3 + $0xf0] sm:$0xff]
  %v231 = vld [vmem:[%s3 + $0xf8] sm:$0xff]
  %v232 = vld [vmem:[%s3 + $0x100] sm:$0xff]
  %v233 = vld [vmem:[%s3 + $0x108] sm:$0xff]
  %v234 = vld [vmem:[%s3 + $0x110] sm:$0xff]
  %v235 = vld [vmem:[%s3 + $0x118] sm:$0xff]
  %v236 = vld [vmem:[%s3 + $0x120] sm:$0xff]
  %v237 = vld [vmem:[%s3 + $0x128] sm:$0xff]
  %v238 = vld [vmem:[%s3 + $0x130] sm:$0xff]
  %v239 = vld [vmem:[%s3 + $0x138] sm:$0xff]
  %v240 = vld [vmem:[%s3 + $0x140] sm:$0xff]
  %v241 = vld [vmem:[%s3 + $0x148] sm:$0xff]
  %v242 = vld [vmem:[%s3 + $0x150] sm:$0xff]
  %v243 = vld [vmem:[%s3 + $0x158] sm:$0xff]
  %v244 = vld [vmem:[%s3 + $0x160] sm:$0xff]
  %v245 = vld [vmem:[%s3 + $0x168] sm:$0xff]
  %v246 = vld [vmem:[%s3 + $0x170] sm:$0xff]
  %v247 = vld [vmem:[%s3 + $0x178] sm:$0xff]
  %v248 = vld [vmem:[%s3 + $0x180] sm:$0xff]
  %v249 = vld [vmem:[%s3 + $0x188] sm:$0xff]
  %v250 = vld [vmem:[%s3 + $0x190] sm:$0xff]
  %v251 = vld [vmem:[%s3 + $0x198] sm:$0xff]
  %v252 = vld [vmem:[%s3 + $0x1a0] sm:$0xff]
  %v253 = vld [vmem:[%s3 + $0x1a8] sm:$0xff]
  %v254 = vld [vmem:[%s3 + $0x1b0] sm:$0xff]
  %v255 = vld [vmem:[%s3 + $0x1b8] sm:$0xff]
  %v256 = vld [vmem:[%s3 + $0x1c0] sm:$0xff]
  %v257 = vld [vmem:[%s3 + $0x1c8] sm:$0xff]
  %v258 = vld [vmem:[%s3 + $0x1d0] sm:$0xff]
  %v259 = vld [vmem:[%s3 + $0x1d8] sm:$0xff]
  %v260 = vld [vmem:[%s3 + $0x1e0] sm:$0xff]
  %v261 = vld [vmem:[%s3 + $0x1e8] sm:$0xff]
  %v262 = vld [vmem:[%s3 + $0x1f0] sm:$0xff]
  %v263 = vld [vmem:[%s3 + $0x1f8] sm:$0xff]
  %v264 = vld [vmem:[%s4] sm:$0xf]
  %v266 = vlaneseq
  %v267 = vshrl.u32 %v266, 7
  %v268 = vsub.s32 0, %v267
  %v269 = vrot.slane %v264, %v268
  %v270 = vlaneseq
  %v271 = vshrl.u32 %v270, 7
  %v272 = vsub.s32 1, %v271
  %v273 = vrot.slane %v264, %v272
  %v274 = vlaneseq
  %v275 = vshrl.u32 %v274, 7
  %v276 = vsub.s32 2, %v275
  %v277 = vrot.slane %v264, %v276
  %v278 = vlaneseq
  %v279 = vshrl.u32 %v278, 7
  %v280 = vsub.s32 3, %v279
  %v281 = vrot.slane %v264, %v280
  %v350 = vunpack.c.l.b16 %v200
  %v351 = vunpack.c.h.b16 %v200
  %v352 = vunpack.c.l.b16 %v201
  %v353 = vunpack.c.h.b16 %v201
  %v354 = vunpack.c.l.b16 %v202
  %v355 = vunpack.c.h.b16 %v202
  %v356 = vunpack.c.l.b16 %v203
  %v357 = vunpack.c.h.b16 %v203
  %v358 = vunpack.c.l.b16 %v204
  %v359 = vunpack.c.h.b16 %v204
  %v360 = vunpack.c.l.b16 %v205
  %v361 = vunpack.c.h.b16 %v205
  %v362 = vunpack.c.l.b16 %v206
  %v363 = vunpack.c.h.b16 %v206
  %v364 = vunpack.c.l.b16 %v207
  %v365 = vunpack.c.h.b16 %v207
  %v366 = vunpack.c.l.b16 %v208
  %v367 = vunpack.c.h.b16 %v208
  %v368 = vunpack.c.l.b16 %v209
  %v369 = vunpack.c.h.b16 %v209
  %v370 = vunpack.c.l.b16 %v210
  %v371 = vunpack.c.h.b16 %v210
  %v372 = vunpack.c.l.b16 %v211
  %v373 = vunpack.c.h.b16 %v211
  %v374 = vunpack.c.l.b16 %v212
  %v375 = vunpack.c.h.b16 %v212
  %v376 = vunpack.c.l.b16 %v213
  %v377 = vunpack.c.h.b16 %v213
  %v378 = vunpack.c.l.b16 %v214
  %v379 = vunpack.c.h.b16 %v214
  %v380 = vunpack.c.l.b16 %v215
  %v381 = vunpack.c.h.b16 %v215
  %v382 = vunpack.c.l.b16 %v216
  %v383 = vunpack.c.h.b16 %v216
  %v384 = vunpack.c.l.b16 %v217
  %v385 = vunpack.c.h.b16 %v217
  %v386 = vunpack.c.l.b16 %v218
  %v387 = vunpack.c.h.b16 %v218
  %v388 = vunpack.c.l.b16 %v219
  %v389 = vunpack.c.h.b16 %v219
  %v390 = vunpack.c.l.b16 %v220
  %v391 = vunpack.c.h.b16 %v220
  %v392 = vunpack.c.l.b16 %v221
  %v393 = vunpack.c.h.b16 %v221
  %v394 = vunpack.c.l.b16 %v222
  %v395 = vunpack.c.h.b16 %v222
  %v396 = vunpack.c.l.b16 %v223
  %v397 = vunpack.c.h.b16 %v223
  %v398 = vunpack.c.l.b16 %v224
  %v399 = vunpack.c.h.b16 %v224
  %v400 = vunpack.c.l.b16 %v225
  %v401 = vunpack.c.h.b16 %v225
  %v402 = vunpack.c.l.b16 %v226
  %v403 = vunpack.c.h.b16 %v226
  %v404 = vunpack.c.l.b16 %v227
  %v405 = vunpack.c.h.b16 %v227
  %v406 = vunpack.c.l.b16 %v228
  %v407 = vunpack.c.h.b16 %v228
  %v408 = vunpack.c.l.b16 %v229
  %v409 = vunpack.c.h.b16 %v229
  %v410 = vunpack.c.l.b16 %v230
  %v411 = vunpack.c.h.b16 %v230
  %v412 = vunpack.c.l.b16 %v231
  %v413 = vunpack.c.h.b16 %v231
  %v414 = vunpack.c.l.b16 %v232
  %v415 = vunpack.c.h.b16 %v232
  %v416 = vunpack.c.l.b16 %v233
  %v417 = vunpack.c.h.b16 %v233
  %v418 = vunpack.c.l.b16 %v234
  %v419 = vunpack.c.h.b16 %v234
  %v420 = vunpack.c.l.b16 %v235
  %v421 = vunpack.c.h.b16 %v235
  %v422 = vunpack.c.l.b16 %v236
  %v423 = vunpack.c.h.b16 %v236
  %v424 = vunpack.c.l.b16 %v237
  %v425 = vunpack.c.h.b16 %v237
  %v426 = vunpack.c.l.b16 %v238
  %v427 = vunpack.c.h.b16 %v238
  %v428 = vunpack.c.l.b16 %v239
  %v429 = vunpack.c.h.b16 %v239
  %v430 = vunpack.c.l.b16 %v240
  %v431 = vunpack.c.h.b16 %v240
  %v432 = vunpack.c.l.b16 %v241
  %v433 = vunpack.c.h.b16 %v241
  %v434 = vunpack.c.l.b16 %v242
  %v435 = vunpack.c.h.b16 %v242
  %v436 = vunpack.c.l.b16 %v243
  %v437 = vunpack.c.h.b16 %v243
  %v438 = vunpack.c.l.b16 %v244
  %v439 = vunpack.c.h.b16 %v244
  %v440 = vunpack.c.l.b16 %v245
  %v441 = vunpack.c.h.b16 %v245
  %v442 = vunpack.c.l.b16 %v246
  %v443 = vunpack.c.h.b16 %v246
  %v444 = vunpack.c.l.b16 %v247
  %v445 = vunpack.c.h.b16 %v247
  %v446 = vunpack.c.l.b16 %v248
  %v447 = vunpack.c.h.b16 %v248
  %v448 = vunpack.c.l.b16 %v249
  %v449 = vunpack.c.h.b16 %v249
  %v450 = vunpack.c.l.b16 %v250
  %v451 = vunpack.c.h.b16 %v250
  %v452 = vunpack.c.l.b16 %v251
  %v453 = vunpack.c.h.b16 %v251
  %v454 = vunpack.c.l.b16 %v252
  %v455 = vunpack.c.h.b16 %v252
  %v456 = vunpack.c.l.b16 %v253
  %v457 = vunpack.c.h.b16 %v253
  %v458 = vunpack.c.l.b16 %v254
  %v459 = vunpack.c.h.b16 %v254
  %v460 = vunpack.c.l.b16 %v255
  %v461 = vunpack.c.h.b16 %v255
  %v462 = vunpack.c.l.b16 %v256
  %v463 = vunpack.c.h.b16 %v256
  %v464 = vunpack.c.l.b16 %v257
  %v465 = vunpack.c.h.b16 %v257
  %v466 = vunpack.c.l.b16 %v258
  %v467 = vunpack.c.h.b16 %v258
  %v468 = vunpack.c.l.b16 %v259
  %v469 = vunpack.c.h.b16 %v259
  %v470 = vunpack.c.l.b16 %v260
  %v471 = vunpack.c.h.b16 %v260
  %v472 = vunpack.c.l.b16 %v261
  %v473 = vunpack.c.h.b16 %v261
  %v474 = vunpack.c.l.b16 %v262
  %v475 = vunpack.c.h.b16 %v262
  %v476 = vunpack.c.l.b16 %v263
  %v477 = vunpack.c.h.b16 %v263
  %v478 = vpack.c.b16 %v354, %v350
  %v479 = vpack.c.b16 %v355, %v351
  %v480 = vpack.c.b16 %v356, %v352
  %v481 = vpack.c.b16 %v357, %v353
  %v482 = vpack.c.b16 %v362, %v358
  %v483 = vpack.c.b16 %v363, %v359
  %v484 = vpack.c.b16 %v364, %v360
  %v485 = vpack.c.b16 %v365, %v361
  %v486 = vpack.c.b16 %v370, %v366
  %v487 = vpack.c.b16 %v371, %v367
  %v488 = vpack.c.b16 %v372, %v368
  %v489 = vpack.c.b16 %v373, %v369
  %v490 = vpack.c.b16 %v378, %v374
  %v491 = vpack.c.b16 %v379, %v375
  %v492 = vpack.c.b16 %v380, %v376
  %v493 = vpack.c.b16 %v381, %v377
  %v494 = vpack.c.b16 %v386, %v382
  %v495 = vpack.c.b16 %v387, %v383
  %v496 = vpack.c.b16 %v388, %v384
  %v497 = vpack.c.b16 %v389, %v385
  %v498 = vpack.c.b16 %v394, %v390
  %v499 = vpack.c.b16 %v395, %v391
  %v500 = vpack.c.b16 %v396, %v392
  %v501 = vpack.c.b16 %v397, %v393
  %v502 = vpack.c.b16 %v402, %v398
  %v503 = vpack.c.b16 %v403, %v399
  %v504 = vpack.c.b16 %v404, %v400
  %v505 = vpack.c.b16 %v405, %v401
  %v506 = vpack.c.b16 %v410, %v406
  %v507 = vpack.c.b16 %v411, %v407
  %v508 = vpack.c.b16 %v412, %v408
  %v509 = vpack.c.b16 %v413, %v409
  %v510 = vpack.c.b16 %v418, %v414
  %v511 = vpack.c.b16 %v419, %v415
  %v512 = vpack.c.b16 %v420, %v416
  %v513 = vpack.c.b16 %v421, %v417
  %v514 = vpack.c.b16 %v426, %v422
  %v515 = vpack.c.b16 %v427, %v423
  %v516 = vpack.c.b16 %v428, %v424
  %v517 = vpack.c.b16 %v429, %v425
  %v518 = vpack.c.b16 %v434, %v430
  %v519 = vpack.c.b16 %v435, %v431
  %v520 = vpack.c.b16 %v436, %v432
  %v521 = vpack.c.b16 %v437, %v433
  %v522 = vpack.c.b16 %v442, %v438
  %v523 = vpack.c.b16 %v443, %v439
  %v524 = vpack.c.b16 %v444, %v440
  %v525 = vpack.c.b16 %v445, %v441
  %v526 = vpack.c.b16 %v450, %v446
  %v527 = vpack.c.b16 %v451, %v447
  %v528 = vpack.c.b16 %v452, %v448
  %v529 = vpack.c.b16 %v453, %v449
  %v530 = vpack.c.b16 %v458, %v454
  %v531 = vpack.c.b16 %v459, %v455
  %v532 = vpack.c.b16 %v460, %v456
  %v533 = vpack.c.b16 %v461, %v457
  %v534 = vpack.c.b16 %v466, %v462
  %v535 = vpack.c.b16 %v467, %v463
  %v536 = vpack.c.b16 %v468, %v464
  %v537 = vpack.c.b16 %v469, %v465
  %v538 = vpack.c.b16 %v474, %v470
  %v539 = vpack.c.b16 %v475, %v471
  %v540 = vpack.c.b16 %v476, %v472
  %v541 = vpack.c.b16 %v477, %v473
  %606 = vmatprep.subr.bf16.mxu0 %v507
  %607 = vmatpush1.bf16.msra.mxu0 %v506
  %608 = vmatprep.subr.bf16.mxu0 %v503
  %609 = vmatpush1.bf16.msra.mxu0 %v502
  %610 = vmatprep.subr.bf16.mxu0 %v499
  %611 = vmatpush1.bf16.msra.mxu0 %v498
  %612 = vmatprep.subr.bf16.mxu0 %v495
  %613 = vmatpush1.bf16.msra.mxu0 %v494
  %614 = vmatprep.subr.bf16.mxu0 %v491
  %615 = vmatpush1.bf16.msra.mxu0 %v490
  %616 = vmatprep.subr.bf16.mxu0 %v487
  %617 = vmatpush1.bf16.msra.mxu0 %v486
  %618 = vmatprep.subr.bf16.mxu0 %v483
  %619 = vmatpush1.bf16.msra.mxu0 %v482
  %620 = vmatprep.subr.bf16.mxu0 %v479
  %621 = vmatpush1.bf16.msra.mxu0 %v478
  %622 = vmatprep.subr.bf16.mxu0 %v539
  %623 = vmatpush2.bf16.msra.mxu0 %v538
  %624 = vmatprep.subr.bf16.mxu0 %v535
  %625 = vmatpush2.bf16.msra.mxu0 %v534
  %626 = vmatprep.subr.bf16.mxu0 %v531
  %627 = vmatpush2.bf16.msra.mxu0 %v530
  %628 = vmatprep.subr.bf16.mxu0 %v527
  %629 = vmatpush2.bf16.msra.mxu0 %v526
  %630 = vmatprep.subr.bf16.mxu0 %v523
  %631 = vmatpush2.bf16.msra.mxu0 %v522
  %632 = vmatprep.subr.bf16.mxu0 %v519
  %633 = vmatpush2.bf16.msra.mxu0 %v518
  %634 = vmatprep.subr.bf16.mxu0 %v515
  %635 = vmatpush2.bf16.msra.mxu0 %v514
  %636 = vmatprep.subr.bf16.mxu0 %v511
  %637 = vmatpush2.bf16.msra.mxu0 %v510
  %638 = vmatprep.mubr.bf16.mxu0 %v199
  %639 = vmatmul.mubr.bf16.gmra.mxu0 %v198
  %v640 = vpop.f32.mrf.mxu0
  %v641 = vadd.f32 %v269, %v640
  %v642 = vpop.f32.mrf.mxu0
  %v643 = vadd.f32 %v273, %v642
  %v644 = vpop.f32.mrf.mxu0
  %v645 = vadd.f32 %v269, %v644
  %v646 = vpop.f32.mrf.mxu0
  %v647 = vadd.f32 %v273, %v646
  %648 = vdwg.mxu0
  %649 = vmatprep.subr.bf16.mxu0 %v509
  %650 = vmatpush1.bf16.msra.mxu0 %v508
  %651 = vmatprep.subr.bf16.mxu0 %v505
  %652 = vmatpush1.bf16.msra.mxu0 %v504
  %653 = vmatprep.subr.bf16.mxu0 %v501
  %654 = vmatpush1.bf16.msra.mxu0 %v500
  %655 = vmatprep.subr.bf16.mxu0 %v497
  %656 = vmatpush1.bf16.msra.mxu0 %v496
  %657 = vmatprep.subr.bf16.mxu0 %v493
  %658 = vmatpush1.bf16.msra.mxu0 %v492
  %659 = vmatprep.subr.bf16.mxu0 %v489
  %660 = vmatpush1.bf16.msra.mxu0 %v488
  %661 = vmatprep.subr.bf16.mxu0 %v485
  %662 = vmatpush1.bf16.msra.mxu0 %v484
  %663 = vmatprep.subr.bf16.mxu0 %v481
  %664 = vmatpush1.bf16.msra.mxu0 %v480
  %665 = vmatprep.subr.bf16.mxu0 %v541
  %666 = vmatpush2.bf16.msra.mxu0 %v540
  %667 = vmatprep.subr.bf16.mxu0 %v537
  %668 = vmatpush2.bf16.msra.mxu0 %v536
  %669 = vmatprep.subr.bf16.mxu0 %v533
  %670 = vmatpush2.bf16.msra.mxu0 %v532
  %671 = vmatprep.subr.bf16.mxu0 %v529
  %672 = vmatpush2.bf16.msra.mxu0 %v528
  %673 = vmatprep.subr.bf16.mxu0 %v525
  %674 = vmatpush2.bf16.msra.mxu0 %v524
  %675 = vmatprep.subr.bf16.mxu0 %v521
  %676 = vmatpush2.bf16.msra.mxu0 %v520
  %677 = vmatprep.subr.bf16.mxu0 %v517
  %678 = vmatpush2.bf16.msra.mxu0 %v516
  %679 = vmatprep.subr.bf16.mxu0 %v513
  %680 = vmatpush2.bf16.msra.mxu0 %v512
  %681 = vmatprep.mubr.bf16.mxu0 %v199
  %682 = vmatmul.mubr.bf16.gmra.mxu0 %v198
  %v683 = vpop.f32.mrf.mxu0
  %v684 = vadd.f32 %v277, %v683
  %v685 = vpop.f32.mrf.mxu0
  %v686 = vadd.f32 %v281, %v685
  %v687 = vpop.f32.mrf.mxu0
  %v688 = vadd.f32 %v277, %v687
  %v689 = vpop.f32.mrf.mxu0
  %v690 = vadd.f32 %v281, %v689
  %691 = vdwg.mxu0
  %vm692 = vcmp.gt.f32.partialorder %v641, 0.0
  %vm693 = vcmp.gt.f32.partialorder %v643, 0.0
  %vm694 = vcmp.gt.f32.partialorder %v684, 0.0
  %vm695 = vcmp.gt.f32.partialorder %v686, 0.0
  %vm696 = vcmp.gt.f32.partialorder %v645, 0.0
  %vm697 = vcmp.gt.f32.partialorder %v647, 0.0
  %vm698 = vcmp.gt.f32.partialorder %v688, 0.0
  %vm699 = vcmp.gt.f32.partialorder %v690, 0.0
  %v700 = vmul.f32 %v641, 0.2
  %v701 = vmul.f32 %v643, 0.2
  %v702 = vmul.f32 %v684, 0.2
  %v703 = vmul.f32 %v686, 0.2
  %v704 = vmul.f32 %v645, 0.2
  %v705 = vmul.f32 %v647, 0.2
  %v706 = vmul.f32 %v688, 0.2
  %v707 = vmul.f32 %v690, 0.2
  %v708 = vsel %vm692, %v641, %v700
  %v709 = vsel %vm693, %v643, %v701
  %v710 = vsel %vm694, %v684, %v702
  %v711 = vsel %vm695, %v686, %v703
  %v712 = vsel %vm696, %v645, %v704
  %v713 = vsel %vm697, %v647, %v705
  %v714 = vsel %vm698, %v688, %v706
  %v715 = vsel %vm699, %v690, %v707
  %v716 = vpack.c.bf16 %v712, %v708
  %v717 = vpack.c.bf16 %v713, %v709
  %v718 = vpack.c.bf16 %v714, %v710
  %v719 = vpack.c.bf16 %v715, %v711
  %v720 = vld [vmem:[%s5] sm:$0xff]
  %v721 = vld [vmem:[%s5 + $0x8] sm:$0xff]
  %v722 = vld [vmem:[%s5 + $0x10] sm:$0xff]
  %v723 = vld [vmem:[%s5 + $0x18] sm:$0xf]
  %v724 = vld [vmem:[%s5 + $0x1c] sm:$0xff]
  %v725 = vld [vmem:[%s5 + $0x24] sm:$0xff]
  %v726 = vld [vmem:[%s5 + $0x2c] sm:$0xff]
  %v727 = vld [vmem:[%s5 + $0x34] sm:$0xf]
  %v728 = vld [vmem:[%s5 + $0x38] sm:$0xff]
  %v729 = vld [vmem:[%s5 + $0x40] sm:$0xff]
  %v730 = vld [vmem:[%s5 + $0x48] sm:$0xff]
  %v731 = vld [vmem:[%s5 + $0x50] sm:$0xf]
  %v732 = vld [vmem:[%s5 + $0x54] sm:$0xff]
  %v733 = vld [vmem:[%s5 + $0x5c] sm:$0xff]
  %v734 = vld [vmem:[%s5 + $0x64] sm:$0xff]
  %v735 = vld [vmem:[%s5 + $0x6c] sm:$0xf]
  %v736 = vld [vmem:[%s5 + $0x70] sm:$0xff]
  %v737 = vld [vmem:[%s5 + $0x78] sm:$0xff]
  %v738 = vld [vmem:[%s5 + $0x80] sm:$0xff]
  %v739 = vld [vmem:[%s5 + $0x88] sm:$0xf]
  %v740 = vld [vmem:[%s5 + $0x8c] sm:$0xff]
  %v741 = vld [vmem:[%s5 + $0x94] sm:$0xff]
  %v742 = vld [vmem:[%s5 + $0x9c] sm:$0xff]
  %v743 = vld [vmem:[%s5 + $0xa4] sm:$0xf]
  %v744 = vld [vmem:[%s5 + $0xa8] sm:$0xff]
  %v745 = vld [vmem:[%s5 + $0xb0] sm:$0xff]
  %v746 = vld [vmem:[%s5 + $0xb8] sm:$0xff]
  %v747 = vld [vmem:[%s5 + $0xc0] sm:$0xf]
  %v748 = vld [vmem:[%s5 + $0xc4] sm:$0xff]
  %v749 = vld [vmem:[%s5 + $0xcc] sm:$0xff]
  %v750 = vld [vmem:[%s5 + $0xd4] sm:$0xff]
  %v751 = vld [vmem:[%s5 + $0xdc] sm:$0xf]
  %v752 = vld [vmem:[%s5 + $0xe0] sm:$0xff]
  %v753 = vld [vmem:[%s5 + $0xe8] sm:$0xff]
  %v754 = vld [vmem:[%s5 + $0xf0] sm:$0xff]
  %v755 = vld [vmem:[%s5 + $0xf8] sm:$0xf]
  %v756 = vld [vmem:[%s5 + $0xfc] sm:$0xff]
  %v757 = vld [vmem:[%s5 + $0x104] sm:$0xff]
  %v758 = vld [vmem:[%s5 + $0x10c] sm:$0xff]
  %v759 = vld [vmem:[%s5 + $0x114] sm:$0xf]
  %v760 = vld [vmem:[%s5 + $0x118] sm:$0xff]
  %v761 = vld [vmem:[%s5 + $0x120] sm:$0xff]
  %v762 = vld [vmem:[%s5 + $0x128] sm:$0xff]
  %v763 = vld [vmem:[%s5 + $0x130] sm:$0xf]
  %v764 = vld [vmem:[%s5 + $0x134] sm:$0xff]
  %v765 = vld [vmem:[%s5 + $0x13c] sm:$0xff]
  %v766 = vld [vmem:[%s5 + $0x144] sm:$0xff]
  %v767 = vld [vmem:[%s5 + $0x14c] sm:$0xf]
  %v768 = vld [vmem:[%s5 + $0x150] sm:$0xff]
  %v769 = vld [vmem:[%s5 + $0x158] sm:$0xff]
  %v770 = vld [vmem:[%s5 + $0x160] sm:$0xff]
  %v771 = vld [vmem:[%s5 + $0x168] sm:$0xf]
  %v772 = vld [vmem:[%s5 + $0x16c] sm:$0xff]
  %v773 = vld [vmem:[%s5 + $0x174] sm:$0xff]
  %v774 = vld [vmem:[%s5 + $0x17c] sm:$0xff]
  %v775 = vld [vmem:[%s5 + $0x184] sm:$0xf]
  %v776 = vld [vmem:[%s5 + $0x188] sm:$0xff]
  %v777 = vld [vmem:[%s5 + $0x190] sm:$0xff]
  %v778 = vld [vmem:[%s5 + $0x198] sm:$0xff]
  %v779 = vld [vmem:[%s5 + $0x1a0] sm:$0xf]
  %v780 = vld [vmem:[%s5 + $0x1a4] sm:$0xff]
  %v781 = vld [vmem:[%s5 + $0x1ac] sm:$0xff]
  %v782 = vld [vmem:[%s5 + $0x1b4] sm:$0xff]
  %v783 = vld [vmem:[%s5 + $0x1bc] sm:$0xf]
  %v784 = vld [vmem:[%s5 + $0x1c0] sm:$0xff]
  %v785 = vld [vmem:[%s5 + $0x1c8] sm:$0xff]
  %v786 = vld [vmem:[%s5 + $0x1d0] sm:$0xff]
  %v787 = vld [vmem:[%s5 + $0x1d8] sm:$0xf]
  %v788 = vld [vmem:[%s5 + $0x1dc] sm:$0xff]
  %v789 = vld [vmem:[%s5 + $0x1e4] sm:$0xff]
  %v790 = vld [vmem:[%s5 + $0x1ec] sm:$0xff]
  %v791 = vld [vmem:[%s5 + $0x1f4] sm:$0xf]
  %v792 = vld [vmem:[%s5 + $0x1f8] sm:$0xff]
  %v793 = vld [vmem:[%s5 + $0x200] sm:$0xff]
  %v794 = vld [vmem:[%s5 + $0x208] sm:$0xff]
  %v795 = vld [vmem:[%s5 + $0x210] sm:$0xf]
  %v796 = vld [vmem:[%s5 + $0x214] sm:$0xff]
  %v797 = vld [vmem:[%s5 + $0x21c] sm:$0xff]
  %v798 = vld [vmem:[%s5 + $0x224] sm:$0xff]
  %v799 = vld [vmem:[%s5 + $0x22c] sm:$0xf]
  %v800 = vld [vmem:[%s5 + $0x230] sm:$0xff]
  %v801 = vld [vmem:[%s5 + $0x238] sm:$0xff]
  %v802 = vld [vmem:[%s5 + $0x240] sm:$0xff]
  %v803 = vld [vmem:[%s5 + $0x248] sm:$0xf]
  %v804 = vld [vmem:[%s5 + $0x24c] sm:$0xff]
  %v805 = vld [vmem:[%s5 + $0x254] sm:$0xff]
  %v806 = vld [vmem:[%s5 + $0x25c] sm:$0xff]
  %v807 = vld [vmem:[%s5 + $0x264] sm:$0xf]
  %v808 = vld [vmem:[%s5 + $0x268] sm:$0xff]
  %v809 = vld [vmem:[%s5 + $0x270] sm:$0xff]
  %v810 = vld [vmem:[%s5 + $0x278] sm:$0xff]
  %v811 = vld [vmem:[%s5 + $0x280] sm:$0xf]
  %v812 = vld [vmem:[%s5 + $0x284] sm:$0xff]
  %v813 = vld [vmem:[%s5 + $0x28c] sm:$0xff]
  %v814 = vld [vmem:[%s5 + $0x294] sm:$0xff]
  %v815 = vld [vmem:[%s5 + $0x29c] sm:$0xf]
  %v816 = vld [vmem:[%s5 + $0x2a0] sm:$0xff]
  %v817 = vld [vmem:[%s5 + $0x2a8] sm:$0xff]
  %v818 = vld [vmem:[%s5 + $0x2b0] sm:$0xff]
  %v819 = vld [vmem:[%s5 + $0x2b8] sm:$0xf]
  %v820 = vld [vmem:[%s5 + $0x2bc] sm:$0xff]
  %v821 = vld [vmem:[%s5 + $0x2c4] sm:$0xff]
  %v822 = vld [vmem:[%s5 + $0x2cc] sm:$0xff]
  %v823 = vld [vmem:[%s5 + $0x2d4] sm:$0xf]
  %v824 = vld [vmem:[%s5 + $0x2d8] sm:$0xff]
  %v825 = vld [vmem:[%s5 + $0x2e0] sm:$0xff]
  %v826 = vld [vmem:[%s5 + $0x2e8] sm:$0xff]
  %v827 = vld [vmem:[%s5 + $0x2f0] sm:$0xf]
  %v828 = vld [vmem:[%s5 + $0x2f4] sm:$0xff]
  %v829 = vld [vmem:[%s5 + $0x2fc] sm:$0xff]
  %v830 = vld [vmem:[%s5 + $0x304] sm:$0xff]
  %v831 = vld [vmem:[%s5 + $0x30c] sm:$0xf]
  %v832 = vld [vmem:[%s5 + $0x310] sm:$0xff]
  %v833 = vld [vmem:[%s5 + $0x318] sm:$0xff]
  %v834 = vld [vmem:[%s5 + $0x320] sm:$0xff]
  %v835 = vld [vmem:[%s5 + $0x328] sm:$0xf]
  %v836 = vld [vmem:[%s5 + $0x32c] sm:$0xff]
  %v837 = vld [vmem:[%s5 + $0x334] sm:$0xff]
  %v838 = vld [vmem:[%s5 + $0x33c] sm:$0xff]
  %v839 = vld [vmem:[%s5 + $0x344] sm:$0xf]
  %v840 = vld [vmem:[%s5 + $0x348] sm:$0xff]
  %v841 = vld [vmem:[%s5 + $0x350] sm:$0xff]
  %v842 = vld [vmem:[%s5 + $0x358] sm:$0xff]
  %v843 = vld [vmem:[%s5 + $0x360] sm:$0xf]
  %v844 = vld [vmem:[%s5 + $0x364] sm:$0xff]
  %v845 = vld [vmem:[%s5 + $0x36c] sm:$0xff]
  %v846 = vld [vmem:[%s5 + $0x374] sm:$0xff]
  %v847 = vld [vmem:[%s5 + $0x37c] sm:$0xf]
  %v848 = vld [vmem:[%s5 + $0x380] sm:$0xff]
  %v849 = vld [vmem:[%s5 + $0x388] sm:$0xff]
  %v850 = vld [vmem:[%s5 + $0x390] sm:$0xff]
  %v851 = vld [vmem:[%s5 + $0x398] sm:$0xf]
  %v852 = vld [vmem:[%s5 + $0x39c] sm:$0xff]
  %v853 = vld [vmem:[%s5 + $0x3a4] sm:$0xff]
  %v854 = vld [vmem:[%s5 + $0x3ac] sm:$0xff]
  %v855 = vld [vmem:[%s5 + $0x3b4] sm:$0xf]
  %v856 = vld [vmem:[%s5 + $0x3b8] sm:$0xff]
  %v857 = vld [vmem:[%s5 + $0x3c0] sm:$0xff]
  %v858 = vld [vmem:[%s5 + $0x3c8] sm:$0xff]
  %v859 = vld [vmem:[%s5 + $0x3d0] sm:$0xf]
  %v860 = vld [vmem:[%s5 + $0x3d4] sm:$0xff]
  %v861 = vld [vmem:[%s5 + $0x3dc] sm:$0xff]
  %v862 = vld [vmem:[%s5 + $0x3e4] sm:$0xff]
  %v863 = vld [vmem:[%s5 + $0x3ec] sm:$0xf]
  %v864 = vld [vmem:[%s5 + $0x3f0] sm:$0xff]
  %v865 = vld [vmem:[%s5 + $0x3f8] sm:$0xff]
  %v866 = vld [vmem:[%s5 + $0x400] sm:$0xff]
  %v867 = vld [vmem:[%s5 + $0x408] sm:$0xf]
  %v868 = vld [vmem:[%s5 + $0x40c] sm:$0xff]
  %v869 = vld [vmem:[%s5 + $0x414] sm:$0xff]
  %v870 = vld [vmem:[%s5 + $0x41c] sm:$0xff]
  %v871 = vld [vmem:[%s5 + $0x424] sm:$0xf]
  %v872 = vld [vmem:[%s5 + $0x428] sm:$0xff]
  %v873 = vld [vmem:[%s5 + $0x430] sm:$0xff]
  %v874 = vld [vmem:[%s5 + $0x438] sm:$0xff]
  %v875 = vld [vmem:[%s5 + $0x440] sm:$0xf]
  %v876 = vld [vmem:[%s5 + $0x444] sm:$0xff]
  %v877 = vld [vmem:[%s5 + $0x44c] sm:$0xff]
  %v878 = vld [vmem:[%s5 + $0x454] sm:$0xff]
  %v879 = vld [vmem:[%s5 + $0x45c] sm:$0xf]
  %v880 = vld [vmem:[%s5 + $0x460] sm:$0xff]
  %v881 = vld [vmem:[%s5 + $0x468] sm:$0xff]
  %v882 = vld [vmem:[%s5 + $0x470] sm:$0xff]
  %v883 = vld [vmem:[%s5 + $0x478] sm:$0xf]
  %v884 = vld [vmem:[%s5 + $0x47c] sm:$0xff]
  %v885 = vld [vmem:[%s5 + $0x484] sm:$0xff]
  %v886 = vld [vmem:[%s5 + $0x48c] sm:$0xff]
  %v887 = vld [vmem:[%s5 + $0x494] sm:$0xf]
  %v888 = vld [vmem:[%s5 + $0x498] sm:$0xff]
  %v889 = vld [vmem:[%s5 + $0x4a0] sm:$0xff]
  %v890 = vld [vmem:[%s5 + $0x4a8] sm:$0xff]
  %v891 = vld [vmem:[%s5 + $0x4b0] sm:$0xf]
  %v892 = vld [vmem:[%s5 + $0x4b4] sm:$0xff]
  %v893 = vld [vmem:[%s5 + $0x4bc] sm:$0xff]
  %v894 = vld [vmem:[%s5 + $0x4c4] sm:$0xff]
  %v895 = vld [vmem:[%s5 + $0x4cc] sm:$0xf]
  %v896 = vld [vmem:[%s5 + $0x4d0] sm:$0xff]
  %v897 = vld [vmem:[%s5 + $0x4d8] sm:$0xff]
  %v898 = vld [vmem:[%s5 + $0x4e0] sm:$0xff]
  %v899 = vld [vmem:[%s5 + $0x4e8] sm:$0xf]
  %v900 = vld [vmem:[%s5 + $0x4ec] sm:$0xff]
  %v901 = vld [vmem:[%s5 + $0x4f4] sm:$0xff]
  %v902 = vld [vmem:[%s5 + $0x4fc] sm:$0xff]
  %v903 = vld [vmem:[%s5 + $0x504] sm:$0xf]
  %v904 = vld [vmem:[%s5 + $0x508] sm:$0xff]
  %v905 = vld [vmem:[%s5 + $0x510] sm:$0xff]
  %v906 = vld [vmem:[%s5 + $0x518] sm:$0xff]
  %v907 = vld [vmem:[%s5 + $0x520] sm:$0xf]
  %v908 = vld [vmem:[%s5 + $0x524] sm:$0xff]
  %v909 = vld [vmem:[%s5 + $0x52c] sm:$0xff]
  %v910 = vld [vmem:[%s5 + $0x534] sm:$0xff]
  %v911 = vld [vmem:[%s5 + $0x53c] sm:$0xf]
  %v912 = vld [vmem:[%s5 + $0x540] sm:$0xff]
  %v913 = vld [vmem:[%s5 + $0x548] sm:$0xff]
  %v914 = vld [vmem:[%s5 + $0x550] sm:$0xff]
  %v915 = vld [vmem:[%s5 + $0x558] sm:$0xf]
  %v916 = vld [vmem:[%s5 + $0x55c] sm:$0xff]
  %v917 = vld [vmem:[%s5 + $0x564] sm:$0xff]
  %v918 = vld [vmem:[%s5 + $0x56c] sm:$0xff]
  %v919 = vld [vmem:[%s5 + $0x574] sm:$0xf]
  %v920 = vld [vmem:[%s5 + $0x578] sm:$0xff]
  %v921 = vld [vmem:[%s5 + $0x580] sm:$0xff]
  %v922 = vld [vmem:[%s5 + $0x588] sm:$0xff]
  %v923 = vld [vmem:[%s5 + $0x590] sm:$0xf]
  %v924 = vld [vmem:[%s5 + $0x594] sm:$0xff]
  %v925 = vld [vmem:[%s5 + $0x59c] sm:$0xff]
  %v926 = vld [vmem:[%s5 + $0x5a4] sm:$0xff]
  %v927 = vld [vmem:[%s5 + $0x5ac] sm:$0xf]
  %v928 = vld [vmem:[%s5 + $0x5b0] sm:$0xff]
  %v929 = vld [vmem:[%s5 + $0x5b8] sm:$0xff]
  %v930 = vld [vmem:[%s5 + $0x5c0] sm:$0xff]
  %v931 = vld [vmem:[%s5 + $0x5c8] sm:$0xf]
  %v932 = vld [vmem:[%s5 + $0x5cc] sm:$0xff]
  %v933 = vld [vmem:[%s5 + $0x5d4] sm:$0xff]
  %v934 = vld [vmem:[%s5 + $0x5dc] sm:$0xff]
  %v935 = vld [vmem:[%s5 + $0x5e4] sm:$0xf]
  %v936 = vld [vmem:[%s5 + $0x5e8] sm:$0xff]
  %v937 = vld [vmem:[%s5 + $0x5f0] sm:$0xff]
  %v938 = vld [vmem:[%s5 + $0x5f8] sm:$0xff]
  %v939 = vld [vmem:[%s5 + $0x600] sm:$0xf]
  %v940 = vld [vmem:[%s5 + $0x604] sm:$0xff]
  %v941 = vld [vmem:[%s5 + $0x60c] sm:$0xff]
  %v942 = vld [vmem:[%s5 + $0x614] sm:$0xff]
  %v943 = vld [vmem:[%s5 + $0x61c] sm:$0xf]
  %v944 = vld [vmem:[%s5 + $0x620] sm:$0xff]
  %v945 = vld [vmem:[%s5 + $0x628] sm:$0xff]
  %v946 = vld [vmem:[%s5 + $0x630] sm:$0xff]
  %v947 = vld [vmem:[%s5 + $0x638] sm:$0xf]
  %v948 = vld [vmem:[%s5 + $0x63c] sm:$0xff]
  %v949 = vld [vmem:[%s5 + $0x644] sm:$0xff]
  %v950 = vld [vmem:[%s5 + $0x64c] sm:$0xff]
  %v951 = vld [vmem:[%s5 + $0x654] sm:$0xf]
  %v952 = vld [vmem:[%s5 + $0x658] sm:$0xff]
  %v953 = vld [vmem:[%s5 + $0x660] sm:$0xff]
  %v954 = vld [vmem:[%s5 + $0x668] sm:$0xff]
  %v955 = vld [vmem:[%s5 + $0x670] sm:$0xf]
  %v956 = vld [vmem:[%s5 + $0x674] sm:$0xff]
  %v957 = vld [vmem:[%s5 + $0x67c] sm:$0xff]
  %v958 = vld [vmem:[%s5 + $0x684] sm:$0xff]
  %v959 = vld [vmem:[%s5 + $0x68c] sm:$0xf]
  %v960 = vld [vmem:[%s5 + $0x690] sm:$0xff]
  %v961 = vld [vmem:[%s5 + $0x698] sm:$0xff]
  %v962 = vld [vmem:[%s5 + $0x6a0] sm:$0xff]
  %v963 = vld [vmem:[%s5 + $0x6a8] sm:$0xf]
  %v964 = vld [vmem:[%s5 + $0x6ac] sm:$0xff]
  %v965 = vld [vmem:[%s5 + $0x6b4] sm:$0xff]
  %v966 = vld [vmem:[%s5 + $0x6bc] sm:$0xff]
  %v967 = vld [vmem:[%s5 + $0x6c4] sm:$0xf]
  %v968 = vld [vmem:[%s5 + $0x6c8] sm:$0xff]
  %v969 = vld [vmem:[%s5 + $0x6d0] sm:$0xff]
  %v970 = vld [vmem:[%s5 + $0x6d8] sm:$0xff]
  %v971 = vld [vmem:[%s5 + $0x6e0] sm:$0xf]
  %v972 = vld [vmem:[%s5 + $0x6e4] sm:$0xff]
  %v973 = vld [vmem:[%s5 + $0x6ec] sm:$0xff]
  %v974 = vld [vmem:[%s5 + $0x6f4] sm:$0xff]
  %v975 = vld [vmem:[%s5 + $0x6fc] sm:$0xf]
  %v976 = vld [vmem:[%s6] sm:$0x7f]
  %v978 = vlaneseq
  %v979 = vshrl.u32 %v978, 7
  %v980 = vsub.s32 0, %v979
  %v981 = vrot.slane %v976, %v980
  %v982 = vlaneseq
  %v983 = vshrl.u32 %v982, 7
  %v984 = vsub.s32 1, %v983
  %v985 = vrot.slane %v976, %v984
  %v986 = vlaneseq
  %v987 = vshrl.u32 %v986, 7
  %v988 = vsub.s32 2, %v987
  %v989 = vrot.slane %v976, %v988
  %v990 = vlaneseq
  %v991 = vshrl.u32 %v990, 7
  %v992 = vsub.s32 3, %v991
  %v993 = vrot.slane %v976, %v992
  %v994 = vlaneseq
  %v995 = vshrl.u32 %v994, 7
  %v996 = vsub.s32 4, %v995
  %v997 = vrot.slane %v976, %v996
  %v998 = vlaneseq
  %v999 = vshrl.u32 %v998, 7
  %v1000 = vsub.s32 5, %v999
  %v1001 = vrot.slane %v976, %v1000
  %v1002 = vlaneseq
  %v1003 = vshrl.u32 %v1002, 7
  %v1004 = vsub.s32 6, %v1003
  %v1005 = vrot.slane %v976, %v1004
  %v1269 = vunpack.c.l.b16 %v720
  %v1270 = vunpack.c.h.b16 %v720
  %v1271 = vunpack.c.l.b16 %v721
  %v1272 = vunpack.c.h.b16 %v721
  %v1273 = vunpack.c.l.b16 %v722
  %v1274 = vunpack.c.h.b16 %v722
  %v1275 = vunpack.c.l.b16 %v723
  %v1276 = vunpack.c.l.b16 %v724
  %v1277 = vunpack.c.h.b16 %v724
  %v1278 = vunpack.c.l.b16 %v725
  %v1279 = vunpack.c.h.b16 %v725
  %v1280 = vunpack.c.l.b16 %v726
  %v1281 = vunpack.c.h.b16 %v726
  %v1282 = vunpack.c.l.b16 %v727
  %v1283 = vunpack.c.l.b16 %v728
  %v1284 = vunpack.c.h.b16 %v728
  %v1285 = vunpack.c.l.b16 %v729
  %v1286 = vunpack.c.h.b16 %v729
  %v1287 = vunpack.c.l.b16 %v730
  %v1288 = vunpack.c.h.b16 %v730
  %v1289 = vunpack.c.l.b16 %v731
  %v1290 = vunpack.c.l.b16 %v732
  %v1291 = vunpack.c.h.b16 %v732
  %v1292 = vunpack.c.l.b16 %v733
  %v1293 = vunpack.c.h.b16 %v733
  %v1294 = vunpack.c.l.b16 %v734
  %v1295 = vunpack.c.h.b16 %v734
  %v1296 = vunpack.c.l.b16 %v735
  %v1297 = vunpack.c.l.b16 %v736
  %v1298 = vunpack.c.h.b16 %v736
  %v1299 = vunpack.c.l.b16 %v737
  %v1300 = vunpack.c.h.b16 %v737
  %v1301 = vunpack.c.l.b16 %v738
  %v1302 = vunpack.c.h.b16 %v738
  %v1303 = vunpack.c.l.b16 %v739
  %v1304 = vunpack.c.l.b16 %v740
  %v1305 = vunpack.c.h.b16 %v740
  %v1306 = vunpack.c.l.b16 %v741
  %v1307 = vunpack.c.h.b16 %v741
  %v1308 = vunpack.c.l.b16 %v742
  %v1309 = vunpack.c.h.b16 %v742
  %v1310 = vunpack.c.l.b16 %v743
  %v1311 = vunpack.c.l.b16 %v744
  %v1312 = vunpack.c.h.b16 %v744
  %v1313 = vunpack.c.l.b16 %v745
  %v1314 = vunpack.c.h.b16 %v745
  %v1315 = vunpack.c.l.b16 %v746
  %v1316 = vunpack.c.h.b16 %v746
  %v1317 = vunpack.c.l.b16 %v747
  %v1318 = vunpack.c.l.b16 %v748
  %v1319 = vunpack.c.h.b16 %v748
  %v1320 = vunpack.c.l.b16 %v749
  %v1321 = vunpack.c.h.b16 %v749
  %v1322 = vunpack.c.l.b16 %v750
  %v1323 = vunpack.c.h.b16 %v750
  %v1324 = vunpack.c.l.b16 %v751
  %v1325 = vunpack.c.l.b16 %v752
  %v1326 = vunpack.c.h.b16 %v752
  %v1327 = vunpack.c.l.b16 %v753
  %v1328 = vunpack.c.h.b16 %v753
  %v1329 = vunpack.c.l.b16 %v754
  %v1330 = vunpack.c.h.b16 %v754
  %v1331 = vunpack.c.l.b16 %v755
  %v1332 = vunpack.c.l.b16 %v756
  %v1333 = vunpack.c.h.b16 %v756
  %v1334 = vunpack.c.l.b16 %v757
  %v1335 = vunpack.c.h.b16 %v757
  %v1336 = vunpack.c.l.b16 %v758
  %v1337 = vunpack.c.h.b16 %v758
  %v1338 = vunpack.c.l.b16 %v759
  %v1339 = vunpack.c.l.b16 %v760
  %v1340 = vunpack.c.h.b16 %v760
  %v1341 = vunpack.c.l.b16 %v761
  %v1342 = vunpack.c.h.b16 %v761
  %v1343 = vunpack.c.l.b16 %v762
  %v1344 = vunpack.c.h.b16 %v762
  %v1345 = vunpack.c.l.b16 %v763
  %v1346 = vunpack.c.l.b16 %v764
  %v1347 = vunpack.c.h.b16 %v764
  %v1348 = vunpack.c.l.b16 %v765
  %v1349 = vunpack.c.h.b16 %v765
  %v1350 = vunpack.c.l.b16 %v766
  %v1351 = vunpack.c.h.b16 %v766
  %v1352 = vunpack.c.l.b16 %v767
  %v1353 = vunpack.c.l.b16 %v768
  %v1354 = vunpack.c.h.b16 %v768
  %v1355 = vunpack.c.l.b16 %v769
  %v1356 = vunpack.c.h.b16 %v769
  %v1357 = vunpack.c.l.b16 %v770
  %v1358 = vunpack.c.h.b16 %v770
  %v1359 = vunpack.c.l.b16 %v771
  %v1360 = vunpack.c.l.b16 %v772
  %v1361 = vunpack.c.h.b16 %v772
  %v1362 = vunpack.c.l.b16 %v773
  %v1363 = vunpack.c.h.b16 %v773
  %v1364 = vunpack.c.l.b16 %v774
  %v1365 = vunpack.c.h.b16 %v774
  %v1366 = vunpack.c.l.b16 %v775
  %v1367 = vunpack.c.l.b16 %v776
  %v1368 = vunpack.c.h.b16 %v776
  %v1369 = vunpack.c.l.b16 %v777
  %v1370 = vunpack.c.h.b16 %v777
  %v1371 = vunpack.c.l.b16 %v778
  %v1372 = vunpack.c.h.b16 %v778
  %v1373 = vunpack.c.l.b16 %v779
  %v1374 = vunpack.c.l.b16 %v780
  %v1375 = vunpack.c.h.b16 %v780
  %v1376 = vunpack.c.l.b16 %v781
  %v1377 = vunpack.c.h.b16 %v781
  %v1378 = vunpack.c.l.b16 %v782
  %v1379 = vunpack.c.h.b16 %v782
  %v1380 = vunpack.c.l.b16 %v783
  %v1381 = vunpack.c.l.b16 %v784
  %v1382 = vunpack.c.h.b16 %v784
  %v1383 = vunpack.c.l.b16 %v785
  %v1384 = vunpack.c.h.b16 %v785
  %v1385 = vunpack.c.l.b16 %v786
  %v1386 = vunpack.c.h.b16 %v786
  %v1387 = vunpack.c.l.b16 %v787
  %v1388 = vunpack.c.l.b16 %v788
  %v1389 = vunpack.c.h.b16 %v788
  %v1390 = vunpack.c.l.b16 %v789
  %v1391 = vunpack.c.h.b16 %v789
  %v1392 = vunpack.c.l.b16 %v790
  %v1393 = vunpack.c.h.b16 %v790
  %v1394 = vunpack.c.l.b16 %v791
  %v1395 = vunpack.c.l.b16 %v792
  %v1396 = vunpack.c.h.b16 %v792
  %v1397 = vunpack.c.l.b16 %v793
  %v1398 = vunpack.c.h.b16 %v793
  %v1399 = vunpack.c.l.b16 %v794
  %v1400 = vunpack.c.h.b16 %v794
  %v1401 = vunpack.c.l.b16 %v795
  %v1402 = vunpack.c.l.b16 %v796
  %v1403 = vunpack.c.h.b16 %v796
  %v1404 = vunpack.c.l.b16 %v797
  %v1405 = vunpack.c.h.b16 %v797
  %v1406 = vunpack.c.l.b16 %v798
  %v1407 = vunpack.c.h.b16 %v798
  %v1408 = vunpack.c.l.b16 %v799
  %v1409 = vunpack.c.l.b16 %v800
  %v1410 = vunpack.c.h.b16 %v800
  %v1411 = vunpack.c.l.b16 %v801
  %v1412 = vunpack.c.h.b16 %v801
  %v1413 = vunpack.c.l.b16 %v802
  %v1414 = vunpack.c.h.b16 %v802
  %v1415 = vunpack.c.l.b16 %v803
  %v1416 = vunpack.c.l.b16 %v804
  %v1417 = vunpack.c.h.b16 %v804
  %v1418 = vunpack.c.l.b16 %v805
  %v1419 = vunpack.c.h.b16 %v805
  %v1420 = vunpack.c.l.b16 %v806
  %v1421 = vunpack.c.h.b16 %v806
  %v1422 = vunpack.c.l.b16 %v807
  %v1423 = vunpack.c.l.b16 %v808
  %v1424 = vunpack.c.h.b16 %v808
  %v1425 = vunpack.c.l.b16 %v809
  %v1426 = vunpack.c.h.b16 %v809
  %v1427 = vunpack.c.l.b16 %v810
  %v1428 = vunpack.c.h.b16 %v810
  %v1429 = vunpack.c.l.b16 %v811
  %v1430 = vunpack.c.l.b16 %v812
  %v1431 = vunpack.c.h.b16 %v812
  %v1432 = vunpack.c.l.b16 %v813
  %v1433 = vunpack.c.h.b16 %v813
  %v1434 = vunpack.c.l.b16 %v814
  %v1435 = vunpack.c.h.b16 %v814
  %v1436 = vunpack.c.l.b16 %v815
  %v1437 = vunpack.c.l.b16 %v816
  %v1438 = vunpack.c.h.b16 %v816
  %v1439 = vunpack.c.l.b16 %v817
  %v1440 = vunpack.c.h.b16 %v817
  %v1441 = vunpack.c.l.b16 %v818
  %v1442 = vunpack.c.h.b16 %v818
  %v1443 = vunpack.c.l.b16 %v819
  %v1444 = vunpack.c.l.b16 %v820
  %v1445 = vunpack.c.h.b16 %v820
  %v1446 = vunpack.c.l.b16 %v821
  %v1447 = vunpack.c.h.b16 %v821
  %v1448 = vunpack.c.l.b16 %v822
  %v1449 = vunpack.c.h.b16 %v822
  %v1450 = vunpack.c.l.b16 %v823
  %v1451 = vunpack.c.l.b16 %v824
  %v1452 = vunpack.c.h.b16 %v824
  %v1453 = vunpack.c.l.b16 %v825
  %v1454 = vunpack.c.h.b16 %v825
  %v1455 = vunpack.c.l.b16 %v826
  %v1456 = vunpack.c.h.b16 %v826
  %v1457 = vunpack.c.l.b16 %v827
  %v1458 = vunpack.c.l.b16 %v828
  %v1459 = vunpack.c.h.b16 %v828
  %v1460 = vunpack.c.l.b16 %v829
  %v1461 = vunpack.c.h.b16 %v829
  %v1462 = vunpack.c.l.b16 %v830
  %v1463 = vunpack.c.h.b16 %v830
  %v1464 = vunpack.c.l.b16 %v831
  %v1465 = vunpack.c.l.b16 %v832
  %v1466 = vunpack.c.h.b16 %v832
  %v1467 = vunpack.c.l.b16 %v833
  %v1468 = vunpack.c.h.b16 %v833
  %v1469 = vunpack.c.l.b16 %v834
  %v1470 = vunpack.c.h.b16 %v834
  %v1471 = vunpack.c.l.b16 %v835
  %v1472 = vunpack.c.l.b16 %v836
  %v1473 = vunpack.c.h.b16 %v836
  %v1474 = vunpack.c.l.b16 %v837
  %v1475 = vunpack.c.h.b16 %v837
  %v1476 = vunpack.c.l.b16 %v838
  %v1477 = vunpack.c.h.b16 %v838
  %v1478 = vunpack.c.l.b16 %v839
  %v1479 = vunpack.c.l.b16 %v840
  %v1480 = vunpack.c.h.b16 %v840
  %v1481 = vunpack.c.l.b16 %v841
  %v1482 = vunpack.c.h.b16 %v841
  %v1483 = vunpack.c.l.b16 %v842
  %v1484 = vunpack.c.h.b16 %v842
  %v1485 = vunpack.c.l.b16 %v843
  %v1486 = vunpack.c.l.b16 %v844
  %v1487 = vunpack.c.h.b16 %v844
  %v1488 = vunpack.c.l.b16 %v845
  %v1489 = vunpack.c.h.b16 %v845
  %v1490 = vunpack.c.l.b16 %v846
  %v1491 = vunpack.c.h.b16 %v846
  %v1492 = vunpack.c.l.b16 %v847
  %v1493 = vunpack.c.l.b16 %v848
  %v1494 = vunpack.c.h.b16 %v848
  %v1495 = vunpack.c.l.b16 %v849
  %v1496 = vunpack.c.h.b16 %v849
  %v1497 = vunpack.c.l.b16 %v850
  %v1498 = vunpack.c.h.b16 %v850
  %v1499 = vunpack.c.l.b16 %v851
  %v1500 = vunpack.c.l.b16 %v852
  %v1501 = vunpack.c.h.b16 %v852
  %v1502 = vunpack.c.l.b16 %v853
  %v1503 = vunpack.c.h.b16 %v853
  %v1504 = vunpack.c.l.b16 %v854
  %v1505 = vunpack.c.h.b16 %v854
  %v1506 = vunpack.c.l.b16 %v855
  %v1507 = vunpack.c.l.b16 %v856
  %v1508 = vunpack.c.h.b16 %v856
  %v1509 = vunpack.c.l.b16 %v857
  %v1510 = vunpack.c.h.b16 %v857
  %v1511 = vunpack.c.l.b16 %v858
  %v1512 = vunpack.c.h.b16 %v858
  %v1513 = vunpack.c.l.b16 %v859
  %v1514 = vunpack.c.l.b16 %v860
  %v1515 = vunpack.c.h.b16 %v860
  %v1516 = vunpack.c.l.b16 %v861
  %v1517 = vunpack.c.h.b16 %v861
  %v1518 = vunpack.c.l.b16 %v862
  %v1519 = vunpack.c.h.b16 %v862
  %v1520 = vunpack.c.l.b16 %v863
  %v1521 = vunpack.c.l.b16 %v864
  %v1522 = vunpack.c.h.b16 %v864
  %v1523 = vunpack.c.l.b16 %v865
  %v1524 = vunpack.c.h.b16 %v865
  %v1525 = vunpack.c.l.b16 %v866
  %v1526 = vunpack.c.h.b16 %v866
  %v1527 = vunpack.c.l.b16 %v867
  %v1528 = vunpack.c.l.b16 %v868
  %v1529 = vunpack.c.h.b16 %v868
  %v1530 = vunpack.c.l.b16 %v869
  %v1531 = vunpack.c.h.b16 %v869
  %v1532 = vunpack.c.l.b16 %v870
  %v1533 = vunpack.c.h.b16 %v870
  %v1534 = vunpack.c.l.b16 %v871
  %v1535 = vunpack.c.l.b16 %v872
  %v1536 = vunpack.c.h.b16 %v872
  %v1537 = vunpack.c.l.b16 %v873
  %v1538 = vunpack.c.h.b16 %v873
  %v1539 = vunpack.c.l.b16 %v874
  %v1540 = vunpack.c.h.b16 %v874
  %v1541 = vunpack.c.l.b16 %v875
  %v1542 = vunpack.c.l.b16 %v876
  %v1543 = vunpack.c.h.b16 %v876
  %v1544 = vunpack.c.l.b16 %v877
  %v1545 = vunpack.c.h.b16 %v877
  %v1546 = vunpack.c.l.b16 %v878
  %v1547 = vunpack.c.h.b16 %v878
  %v1548 = vunpack.c.l.b16 %v879
  %v1549 = vunpack.c.l.b16 %v880
  %v1550 = vunpack.c.h.b16 %v880
  %v1551 = vunpack.c.l.b16 %v881
  %v1552 = vunpack.c.h.b16 %v881
  %v1553 = vunpack.c.l.b16 %v882
  %v1554 = vunpack.c.h.b16 %v882
  %v1555 = vunpack.c.l.b16 %v883
  %v1556 = vunpack.c.l.b16 %v884
  %v1557 = vunpack.c.h.b16 %v884
  %v1558 = vunpack.c.l.b16 %v885
  %v1559 = vunpack.c.h.b16 %v885
  %v1560 = vunpack.c.l.b16 %v886
  %v1561 = vunpack.c.h.b16 %v886
  %v1562 = vunpack.c.l.b16 %v887
  %v1563 = vunpack.c.l.b16 %v888
  %v1564 = vunpack.c.h.b16 %v888
  %v1565 = vunpack.c.l.b16 %v889
  %v1566 = vunpack.c.h.b16 %v889
  %v1567 = vunpack.c.l.b16 %v890
  %v1568 = vunpack.c.h.b16 %v890
  %v1569 = vunpack.c.l.b16 %v891
  %v1570 = vunpack.c.l.b16 %v892
  %v1571 = vunpack.c.h.b16 %v892
  %v1572 = vunpack.c.l.b16 %v893
  %v1573 = vunpack.c.h.b16 %v893
  %v1574 = vunpack.c.l.b16 %v894
  %v1575 = vunpack.c.h.b16 %v894
  %v1576 = vunpack.c.l.b16 %v895
  %v1577 = vunpack.c.l.b16 %v896
  %v1578 = vunpack.c.h.b16 %v896
  %v1579 = vunpack.c.l.b16 %v897
  %v1580 = vunpack.c.h.b16 %v897
  %v1581 = vunpack.c.l.b16 %v898
  %v1582 = vunpack.c.h.b16 %v898
  %v1583 = vunpack.c.l.b16 %v899
  %v1584 = vunpack.c.l.b16 %v900
  %v1585 = vunpack.c.h.b16 %v900
  %v1586 = vunpack.c.l.b16 %v901
  %v1587 = vunpack.c.h.b16 %v901
  %v1588 = vunpack.c.l.b16 %v902
  %v1589 = vunpack.c.h.b16 %v902
  %v1590 = vunpack.c.l.b16 %v903
  %v1591 = vunpack.c.l.b16 %v904
  %v1592 = vunpack.c.h.b16 %v904
  %v1593 = vunpack.c.l.b16 %v905
  %v1594 = vunpack.c.h.b16 %v905
  %v1595 = vunpack.c.l.b16 %v906
  %v1596 = vunpack.c.h.b16 %v906
  %v1597 = vunpack.c.l.b16 %v907
  %v1598 = vunpack.c.l.b16 %v908
  %v1599 = vunpack.c.h.b16 %v908
  %v1600 = vunpack.c.l.b16 %v909
  %v1601 = vunpack.c.h.b16 %v909
  %v1602 = vunpack.c.l.b16 %v910
  %v1603 = vunpack.c.h.b16 %v910
  %v1604 = vunpack.c.l.b16 %v911
  %v1605 = vunpack.c.l.b16 %v912
  %v1606 = vunpack.c.h.b16 %v912
  %v1607 = vunpack.c.l.b16 %v913
  %v1608 = vunpack.c.h.b16 %v913
  %v1609 = vunpack.c.l.b16 %v914
  %v1610 = vunpack.c.h.b16 %v914
  %v1611 = vunpack.c.l.b16 %v915
  %v1612 = vunpack.c.l.b16 %v916
  %v1613 = vunpack.c.h.b16 %v916
  %v1614 = vunpack.c.l.b16 %v917
  %v1615 = vunpack.c.h.b16 %v917
  %v1616 = vunpack.c.l.b16 %v918
  %v1617 = vunpack.c.h.b16 %v918
  %v1618 = vunpack.c.l.b16 %v919
  %v1619 = vunpack.c.l.b16 %v920
  %v1620 = vunpack.c.h.b16 %v920
  %v1621 = vunpack.c.l.b16 %v921
  %v1622 = vunpack.c.h.b16 %v921
  %v1623 = vunpack.c.l.b16 %v922
  %v1624 = vunpack.c.h.b16 %v922
  %v1625 = vunpack.c.l.b16 %v923
  %v1626 = vunpack.c.l.b16 %v924
  %v1627 = vunpack.c.h.b16 %v924
  %v1628 = vunpack.c.l.b16 %v925
  %v1629 = vunpack.c.h.b16 %v925
  %v1630 = vunpack.c.l.b16 %v926
  %v1631 = vunpack.c.h.b16 %v926
  %v1632 = vunpack.c.l.b16 %v927
  %v1633 = vunpack.c.l.b16 %v928
  %v1634 = vunpack.c.h.b16 %v928
  %v1635 = vunpack.c.l.b16 %v929
  %v1636 = vunpack.c.h.b16 %v929
  %v1637 = vunpack.c.l.b16 %v930
  %v1638 = vunpack.c.h.b16 %v930
  %v1639 = vunpack.c.l.b16 %v931
  %v1640 = vunpack.c.l.b16 %v932
  %v1641 = vunpack.c.h.b16 %v932
  %v1642 = vunpack.c.l.b16 %v933
  %v1643 = vunpack.c.h.b16 %v933
  %v1644 = vunpack.c.l.b16 %v934
  %v1645 = vunpack.c.h.b16 %v934
  %v1646 = vunpack.c.l.b16 %v935
  %v1647 = vunpack.c.l.b16 %v936
  %v1648 = vunpack.c.h.b16 %v936
  %v1649 = vunpack.c.l.b16 %v937
  %v1650 = vunpack.c.h.b16 %v937
  %v1651 = vunpack.c.l.b16 %v938
  %v1652 = vunpack.c.h.b16 %v938
  %v1653 = vunpack.c.l.b16 %v939
  %v1654 = vunpack.c.l.b16 %v940
  %v1655 = vunpack.c.h.b16 %v940
  %v1656 = vunpack.c.l.b16 %v941
  %v1657 = vunpack.c.h.b16 %v941
  %v1658 = vunpack.c.l.b16 %v942
  %v1659 = vunpack.c.h.b16 %v942
  %v1660 = vunpack.c.l.b16 %v943
  %v1661 = vunpack.c.l.b16 %v944
  %v1662 = vunpack.c.h.b16 %v944
  %v1663 = vunpack.c.l.b16 %v945
  %v1664 = vunpack.c.h.b16 %v945
  %v1665 = vunpack.c.l.b16 %v946
  %v1666 = vunpack.c.h.b16 %v946
  %v1667 = vunpack.c.l.b16 %v947
  %v1668 = vunpack.c.l.b16 %v948
  %v1669 = vunpack.c.h.b16 %v948
  %v1670 = vunpack.c.l.b16 %v949
  %v1671 = vunpack.c.h.b16 %v949
  %v1672 = vunpack.c.l.b16 %v950
  %v1673 = vunpack.c.h.b16 %v950
  %v1674 = vunpack.c.l.b16 %v951
  %v1675 = vunpack.c.l.b16 %v952
  %v1676 = vunpack.c.h.b16 %v952
  %v1677 = vunpack.c.l.b16 %v953
  %v1678 = vunpack.c.h.b16 %v953
  %v1679 = vunpack.c.l.b16 %v954
  %v1680 = vunpack.c.h.b16 %v954
  %v1681 = vunpack.c.l.b16 %v955
  %v1682 = vunpack.c.l.b16 %v956
  %v1683 = vunpack.c.h.b16 %v956
  %v1684 = vunpack.c.l.b16 %v957
  %v1685 = vunpack.c.h.b16 %v957
  %v1686 = vunpack.c.l.b16 %v958
  %v1687 = vunpack.c.h.b16 %v958
  %v1688 = vunpack.c.l.b16 %v959
  %v1689 = vunpack.c.l.b16 %v960
  %v1690 = vunpack.c.h.b16 %v960
  %v1691 = vunpack.c.l.b16 %v961
  %v1692 = vunpack.c.h.b16 %v961
  %v1693 = vunpack.c.l.b16 %v962
  %v1694 = vunpack.c.h.b16 %v962
  %v1695 = vunpack.c.l.b16 %v963
  %v1696 = vunpack.c.l.b16 %v964
  %v1697 = vunpack.c.h.b16 %v964
  %v1698 = vunpack.c.l.b16 %v965
  %v1699 = vunpack.c.h.b16 %v965
  %v1700 = vunpack.c.l.b16 %v966
  %v1701 = vunpack.c.h.b16 %v966
  %v1702 = vunpack.c.l.b16 %v967
  %v1703 = vunpack.c.l.b16 %v968
  %v1704 = vunpack.c.h.b16 %v968
  %v1705 = vunpack.c.l.b16 %v969
  %v1706 = vunpack.c.h.b16 %v969
  %v1707 = vunpack.c.l.b16 %v970
  %v1708 = vunpack.c.h.b16 %v970
  %v1709 = vunpack.c.l.b16 %v971
  %v1710 = vunpack.c.l.b16 %v972
  %v1711 = vunpack.c.h.b16 %v972
  %v1712 = vunpack.c.l.b16 %v973
  %v1713 = vunpack.c.h.b16 %v973
  %v1714 = vunpack.c.l.b16 %v974
  %v1715 = vunpack.c.h.b16 %v974
  %v1716 = vunpack.c.l.b16 %v975
  %v1717 = vpack.c.b16 %v1276, %v1269
  %v1718 = vpack.c.b16 %v1277, %v1270
  %v1719 = vpack.c.b16 %v1278, %v1271
  %v1720 = vpack.c.b16 %v1279, %v1272
  %v1721 = vpack.c.b16 %v1280, %v1273
  %v1722 = vpack.c.b16 %v1281, %v1274
  %v1723 = vpack.c.b16 %v1282, %v1275
  %v1724 = vpack.c.b16 %v1290, %v1283
  %v1725 = vpack.c.b16 %v1291, %v1284
  %v1726 = vpack.c.b16 %v1292, %v1285
  %v1727 = vpack.c.b16 %v1293, %v1286
  %v1728 = vpack.c.b16 %v1294, %v1287
  %v1729 = vpack.c.b16 %v1295, %v1288
  %v1730 = vpack.c.b16 %v1296, %v1289
  %v1731 = vpack.c.b16 %v1304, %v1297
  %v1732 = vpack.c.b16 %v1305, %v1298
  %v1733 = vpack.c.b16 %v1306, %v1299
  %v1734 = vpack.c.b16 %v1307, %v1300
  %v1735 = vpack.c.b16 %v1308, %v1301
  %v1736 = vpack.c.b16 %v1309, %v1302
  %v1737 = vpack.c.b16 %v1310, %v1303
  %v1738 = vpack.c.b16 %v1318, %v1311
  %v1739 = vpack.c.b16 %v1319, %v1312
  %v1740 = vpack.c.b16 %v1320, %v1313
  %v1741 = vpack.c.b16 %v1321, %v1314
  %v1742 = vpack.c.b16 %v1322, %v1315
  %v1743 = vpack.c.b16 %v1323, %v1316
  %v1744 = vpack.c.b16 %v1324, %v1317
  %v1745 = vpack.c.b16 %v1332, %v1325
  %v1746 = vpack.c.b16 %v1333, %v1326
  %v1747 = vpack.c.b16 %v1334, %v1327
  %v1748 = vpack.c.b16 %v1335, %v1328
  %v1749 = vpack.c.b16 %v1336, %v1329
  %v1750 = vpack.c.b16 %v1337, %v1330
  %v1751 = vpack.c.b16 %v1338, %v1331
  %v1752 = vpack.c.b16 %v1346, %v1339
  %v1753 = vpack.c.b16 %v1347, %v1340
  %v1754 = vpack.c.b16 %v1348, %v1341
  %v1755 = vpack.c.b16 %v1349, %v1342
  %v1756 = vpack.c.b16 %v1350, %v1343
  %v1757 = vpack.c.b16 %v1351, %v1344
  %v1758 = vpack.c.b16 %v1352, %v1345
  %v1759 = vpack.c.b16 %v1360, %v1353
  %v1760 = vpack.c.b16 %v1361, %v1354
  %v1761 = vpack.c.b16 %v1362, %v1355
  %v1762 = vpack.c.b16 %v1363, %v1356
  %v1763 = vpack.c.b16 %v1364, %v1357
  %v1764 = vpack.c.b16 %v1365, %v1358
  %v1765 = vpack.c.b16 %v1366, %v1359
  %v1766 = vpack.c.b16 %v1374, %v1367
  %v1767 = vpack.c.b16 %v1375, %v1368
  %v1768 = vpack.c.b16 %v1376, %v1369
  %v1769 = vpack.c.b16 %v1377, %v1370
  %v1770 = vpack.c.b16 %v1378, %v1371
  %v1771 = vpack.c.b16 %v1379, %v1372
  %v1772 = vpack.c.b16 %v1380, %v1373
  %v1773 = vpack.c.b16 %v1388, %v1381
  %v1774 = vpack.c.b16 %v1389, %v1382
  %v1775 = vpack.c.b16 %v1390, %v1383
  %v1776 = vpack.c.b16 %v1391, %v1384
  %v1777 = vpack.c.b16 %v1392, %v1385
  %v1778 = vpack.c.b16 %v1393, %v1386
  %v1779 = vpack.c.b16 %v1394, %v1387
  %v1780 = vpack.c.b16 %v1402, %v1395
  %v1781 = vpack.c.b16 %v1403, %v1396
  %v1782 = vpack.c.b16 %v1404, %v1397
  %v1783 = vpack.c.b16 %v1405, %v1398
  %v1784 = vpack.c.b16 %v1406, %v1399
  %v1785 = vpack.c.b16 %v1407, %v1400
  %v1786 = vpack.c.b16 %v1408, %v1401
  %v1787 = vpack.c.b16 %v1416, %v1409
  %v1788 = vpack.c.b16 %v1417, %v1410
  %v1789 = vpack.c.b16 %v1418, %v1411
  %v1790 = vpack.c.b16 %v1419, %v1412
  %v1791 = vpack.c.b16 %v1420, %v1413
  %v1792 = vpack.c.b16 %v1421, %v1414
  %v1793 = vpack.c.b16 %v1422, %v1415
  %v1794 = vpack.c.b16 %v1430, %v1423
  %v1795 = vpack.c.b16 %v1431, %v1424
  %v1796 = vpack.c.b16 %v1432, %v1425
  %v1797 = vpack.c.b16 %v1433, %v1426
  %v1798 = vpack.c.b16 %v1434, %v1427
  %v1799 = vpack.c.b16 %v1435, %v1428
  %v1800 = vpack.c.b16 %v1436, %v1429
  %v1801 = vpack.c.b16 %v1444, %v1437
  %v1802 = vpack.c.b16 %v1445, %v1438
  %v1803 = vpack.c.b16 %v1446, %v1439
  %v1804 = vpack.c.b16 %v1447, %v1440
  %v1805 = vpack.c.b16 %v1448, %v1441
  %v1806 = vpack.c.b16 %v1449, %v1442
  %v1807 = vpack.c.b16 %v1450, %v1443
  %v1808 = vpack.c.b16 %v1458, %v1451
  %v1809 = vpack.c.b16 %v1459, %v1452
  %v1810 = vpack.c.b16 %v1460, %v1453
  %v1811 = vpack.c.b16 %v1461, %v1454
  %v1812 = vpack.c.b16 %v1462, %v1455
  %v1813 = vpack.c.b16 %v1463, %v1456
  %v1814 = vpack.c.b16 %v1464, %v1457
  %v1815 = vpack.c.b16 %v1472, %v1465
  %v1816 = vpack.c.b16 %v1473, %v1466
  %v1817 = vpack.c.b16 %v1474, %v1467
  %v1818 = vpack.c.b16 %v1475, %v1468
  %v1819 = vpack.c.b16 %v1476, %v1469
  %v1820 = vpack.c.b16 %v1477, %v1470
  %v1821 = vpack.c.b16 %v1478, %v1471
  %v1822 = vpack.c.b16 %v1486, %v1479
  %v1823 = vpack.c.b16 %v1487, %v1480
  %v1824 = vpack.c.b16 %v1488, %v1481
  %v1825 = vpack.c.b16 %v1489, %v1482
  %v1826 = vpack.c.b16 %v1490, %v1483
  %v1827 = vpack.c.b16 %v1491, %v1484
  %v1828 = vpack.c.b16 %v1492, %v1485
  %v1829 = vpack.c.b16 %v1500, %v1493
  %v1830 = vpack.c.b16 %v1501, %v1494
  %v1831 = vpack.c.b16 %v1502, %v1495
  %v1832 = vpack.c.b16 %v1503, %v1496
  %v1833 = vpack.c.b16 %v1504, %v1497
  %v1834 = vpack.c.b16 %v1505, %v1498
  %v1835 = vpack.c.b16 %v1506, %v1499
  %v1836 = vpack.c.b16 %v1514, %v1507
  %v1837 = vpack.c.b16 %v1515, %v1508
  %v1838 = vpack.c.b16 %v1516, %v1509
  %v1839 = vpack.c.b16 %v1517, %v1510
  %v1840 = vpack.c.b16 %v1518, %v1511
  %v1841 = vpack.c.b16 %v1519, %v1512
  %v1842 = vpack.c.b16 %v1520, %v1513
  %v1843 = vpack.c.b16 %v1528, %v1521
  %v1844 = vpack.c.b16 %v1529, %v1522
  %v1845 = vpack.c.b16 %v1530, %v1523
  %v1846 = vpack.c.b16 %v1531, %v1524
  %v1847 = vpack.c.b16 %v1532, %v1525
  %v1848 = vpack.c.b16 %v1533, %v1526
  %v1849 = vpack.c.b16 %v1534, %v1527
  %v1850 = vpack.c.b16 %v1542, %v1535
  %v1851 = vpack.c.b16 %v1543, %v1536
  %v1852 = vpack.c.b16 %v1544, %v1537
  %v1853 = vpack.c.b16 %v1545, %v1538
  %v1854 = vpack.c.b16 %v1546, %v1539
  %v1855 = vpack.c.b16 %v1547, %v1540
  %v1856 = vpack.c.b16 %v1548, %v1541
  %v1857 = vpack.c.b16 %v1556, %v1549
  %v1858 = vpack.c.b16 %v1557, %v1550
  %v1859 = vpack.c.b16 %v1558, %v1551
  %v1860 = vpack.c.b16 %v1559, %v1552
  %v1861 = vpack.c.b16 %v1560, %v1553
  %v1862 = vpack.c.b16 %v1561, %v1554
  %v1863 = vpack.c.b16 %v1562, %v1555
  %v1864 = vpack.c.b16 %v1570, %v1563
  %v1865 = vpack.c.b16 %v1571, %v1564
  %v1866 = vpack.c.b16 %v1572, %v1565
  %v1867 = vpack.c.b16 %v1573, %v1566
  %v1868 = vpack.c.b16 %v1574, %v1567
  %v1869 = vpack.c.b16 %v1575, %v1568
  %v1870 = vpack.c.b16 %v1576, %v1569
  %v1871 = vpack.c.b16 %v1584, %v1577
  %v1872 = vpack.c.b16 %v1585, %v1578
  %v1873 = vpack.c.b16 %v1586, %v1579
  %v1874 = vpack.c.b16 %v1587, %v1580
  %v1875 = vpack.c.b16 %v1588, %v1581
  %v1876 = vpack.c.b16 %v1589, %v1582
  %v1877 = vpack.c.b16 %v1590, %v1583
  %v1878 = vpack.c.b16 %v1598, %v1591
  %v1879 = vpack.c.b16 %v1599, %v1592
  %v1880 = vpack.c.b16 %v1600, %v1593
  %v1881 = vpack.c.b16 %v1601, %v1594
  %v1882 = vpack.c.b16 %v1602, %v1595
  %v1883 = vpack.c.b16 %v1603, %v1596
  %v1884 = vpack.c.b16 %v1604, %v1597
  %v1885 = vpack.c.b16 %v1612, %v1605
  %v1886 = vpack.c.b16 %v1613, %v1606
  %v1887 = vpack.c.b16 %v1614, %v1607
  %v1888 = vpack.c.b16 %v1615, %v1608
  %v1889 = vpack.c.b16 %v1616, %v1609
  %v1890 = vpack.c.b16 %v1617, %v1610
  %v1891 = vpack.c.b16 %v1618, %v1611
  %v1892 = vpack.c.b16 %v1626, %v1619
  %v1893 = vpack.c.b16 %v1627, %v1620
  %v1894 = vpack.c.b16 %v1628, %v1621
  %v1895 = vpack.c.b16 %v1629, %v1622
  %v1896 = vpack.c.b16 %v1630, %v1623
  %v1897 = vpack.c.b16 %v1631, %v1624
  %v1898 = vpack.c.b16 %v1632, %v1625
  %v1899 = vpack.c.b16 %v1640, %v1633
  %v1900 = vpack.c.b16 %v1641, %v1634
  %v1901 = vpack.c.b16 %v1642, %v1635
  %v1902 = vpack.c.b16 %v1643, %v1636
  %v1903 = vpack.c.b16 %v1644, %v1637
  %v1904 = vpack.c.b16 %v1645, %v1638
  %v1905 = vpack.c.b16 %v1646, %v1639
  %v1906 = vpack.c.b16 %v1654, %v1647
  %v1907 = vpack.c.b16 %v1655, %v1648
  %v1908 = vpack.c.b16 %v1656, %v1649
  %v1909 = vpack.c.b16 %v1657, %v1650
  %v1910 = vpack.c.b16 %v1658, %v1651
  %v1911 = vpack.c.b16 %v1659, %v1652
  %v1912 = vpack.c.b16 %v1660, %v1653
  %v1913 = vpack.c.b16 %v1668, %v1661
  %v1914 = vpack.c.b16 %v1669, %v1662
  %v1915 = vpack.c.b16 %v1670, %v1663
  %v1916 = vpack.c.b16 %v1671, %v1664
  %v1917 = vpack.c.b16 %v1672, %v1665
  %v1918 = vpack.c.b16 %v1673, %v1666
  %v1919 = vpack.c.b16 %v1674, %v1667
  %v1920 = vpack.c.b16 %v1682, %v1675
  %v1921 = vpack.c.b16 %v1683, %v1676
  %v1922 = vpack.c.b16 %v1684, %v1677
  %v1923 = vpack.c.b16 %v1685, %v1678
  %v1924 = vpack.c.b16 %v1686, %v1679
  %v1925 = vpack.c.b16 %v1687, %v1680
  %v1926 = vpack.c.b16 %v1688, %v1681
  %v1927 = vpack.c.b16 %v1696, %v1689
  %v1928 = vpack.c.b16 %v1697, %v1690
  %v1929 = vpack.c.b16 %v1698, %v1691
  %v1930 = vpack.c.b16 %v1699, %v1692
  %v1931 = vpack.c.b16 %v1700, %v1693
  %v1932 = vpack.c.b16 %v1701, %v1694
  %v1933 = vpack.c.b16 %v1702, %v1695
  %v1934 = vpack.c.b16 %v1710, %v1703
  %v1935 = vpack.c.b16 %v1711, %v1704
  %v1936 = vpack.c.b16 %v1712, %v1705
  %v1937 = vpack.c.b16 %v1713, %v1706
  %v1938 = vpack.c.b16 %v1714, %v1707
  %v1939 = vpack.c.b16 %v1715, %v1708
  %v1940 = vpack.c.b16 %v1716, %v1709
  %2165 = vmatprep.subr.bf16.mxu0 %v1767
  %2166 = vmatpush1.bf16.msra.mxu0 %v1766
  %2167 = vmatprep.subr.bf16.mxu0 %v1760
  %2168 = vmatpush1.bf16.msra.mxu0 %v1759
  %2169 = vmatprep.subr.bf16.mxu0 %v1753
  %2170 = vmatpush1.bf16.msra.mxu0 %v1752
  %2171 = vmatprep.subr.bf16.mxu0 %v1746
  %2172 = vmatpush1.bf16.msra.mxu0 %v1745
  %2173 = vmatprep.subr.bf16.mxu0 %v1739
  %2174 = vmatpush1.bf16.msra.mxu0 %v1738
  %2175 = vmatprep.subr.bf16.mxu0 %v1732
  %2176 = vmatpush1.bf16.msra.mxu0 %v1731
  %2177 = vmatprep.subr.bf16.mxu0 %v1725
  %2178 = vmatpush1.bf16.msra.mxu0 %v1724
  %2179 = vmatprep.subr.bf16.mxu0 %v1718
  %2180 = vmatpush1.bf16.msra.mxu0 %v1717
  %2181 = vmatprep.subr.bf16.mxu0 %v1823
  %2182 = vmatpush2.bf16.msra.mxu0 %v1822
  %2183 = vmatprep.subr.bf16.mxu0 %v1816
  %2184 = vmatpush2.bf16.msra.mxu0 %v1815
  %2185 = vmatprep.subr.bf16.mxu0 %v1809
  %2186 = vmatpush2.bf16.msra.mxu0 %v1808
  %2187 = vmatprep.subr.bf16.mxu0 %v1802
  %2188 = vmatpush2.bf16.msra.mxu0 %v1801
  %2189 = vmatprep.subr.bf16.mxu0 %v1795
  %2190 = vmatpush2.bf16.msra.mxu0 %v1794
  %2191 = vmatprep.subr.bf16.mxu0 %v1788
  %2192 = vmatpush2.bf16.msra.mxu0 %v1787
  %2193 = vmatprep.subr.bf16.mxu0 %v1781
  %2194 = vmatpush2.bf16.msra.mxu0 %v1780
  %2195 = vmatprep.subr.bf16.mxu0 %v1774
  %2196 = vmatpush2.bf16.msra.mxu0 %v1773
  %2197 = vmatprep.mubr.bf16.mxu0 %v717
  %2198 = vmatmul.mubr.bf16.gmra.mxu0 %v716
  %v2199 = vpop.f32.mrf.mxu0
  %v2200 = vadd.f32 %v981, %v2199
  %v2201 = vpop.f32.mrf.mxu0
  %v2202 = vadd.f32 %v985, %v2201
  %v2203 = vpop.f32.mrf.mxu0
  %v2204 = vadd.f32 %v981, %v2203
  %v2205 = vpop.f32.mrf.mxu0
  %v2206 = vadd.f32 %v985, %v2205
  %2207 = vdwg.mxu0
  %2208 = vmatprep.subr.bf16.mxu0 %v1879
  %2209 = vmatpush1.bf16.msra.mxu0 %v1878
  %2210 = vmatprep.subr.bf16.mxu0 %v1872
  %2211 = vmatpush1.bf16.msra.mxu0 %v1871
  %2212 = vmatprep.subr.bf16.mxu0 %v1865
  %2213 = vmatpush1.bf16.msra.mxu0 %v1864
  %2214 = vmatprep.subr.bf16.mxu0 %v1858
  %2215 = vmatpush1.bf16.msra.mxu0 %v1857
  %2216 = vmatprep.subr.bf16.mxu0 %v1851
  %2217 = vmatpush1.bf16.msra.mxu0 %v1850
  %2218 = vmatprep.subr.bf16.mxu0 %v1844
  %2219 = vmatpush1.bf16.msra.mxu0 %v1843
  %2220 = vmatprep.subr.bf16.mxu0 %v1837
  %2221 = vmatpush1.bf16.msra.mxu0 %v1836
  %2222 = vmatprep.subr.bf16.mxu0 %v1830
  %2223 = vmatpush1.bf16.msra.mxu0 %v1829
  %2224 = vmatprep.subr.bf16.mxu0 %v1935
  %2225 = vmatpush2.bf16.msra.mxu0 %v1934
  %2226 = vmatprep.subr.bf16.mxu0 %v1928
  %2227 = vmatpush2.bf16.msra.mxu0 %v1927
  %2228 = vmatprep.subr.bf16.mxu0 %v1921
  %2229 = vmatpush2.bf16.msra.mxu0 %v1920
  %2230 = vmatprep.subr.bf16.mxu0 %v1914
  %2231 = vmatpush2.bf16.msra.mxu0 %v1913
  %2232 = vmatprep.subr.bf16.mxu0 %v1907
  %2233 = vmatpush2.bf16.msra.mxu0 %v1906
  %2234 = vmatprep.subr.bf16.mxu0 %v1900
  %2235 = vmatpush2.bf16.msra.mxu0 %v1899
  %2236 = vmatprep.subr.bf16.mxu0 %v1893
  %2237 = vmatpush2.bf16.msra.mxu0 %v1892
  %2238 = vmatprep.subr.bf16.mxu0 %v1886
  %2239 = vmatpush2.bf16.msra.mxu0 %v1885
  %2240 = vmatprep.mubr.bf16.mxu0 %v719
  %2241 = vmatmul.mubr.bf16.gmra.mxu0 %v718
  %v2242 = vpop.f32.mrf.mxu0
  %v2243 = vadd.f32 %v2200, %v2242
  %v2244 = vpop.f32.mrf.mxu0
  %v2245 = vadd.f32 %v2202, %v2244
  %v2246 = vpop.f32.mrf.mxu0
  %v2247 = vadd.f32 %v2204, %v2246
  %v2248 = vpop.f32.mrf.mxu0
  %v2249 = vadd.f32 %v2206, %v2248
  %2250 = vdwg.mxu0
  %2251 = vmatprep.subr.bf16.mxu0 %v1769
  %2252 = vmatpush1.bf16.msra.mxu0 %v1768
  %2253 = vmatprep.subr.bf16.mxu0 %v1762
  %2254 = vmatpush1.bf16.msra.mxu0 %v1761
  %2255 = vmatprep.subr.bf16.mxu0 %v1755
  %2256 = vmatpush1.bf16.msra.mxu0 %v1754
  %2257 = vmatprep.subr.bf16.mxu0 %v1748
  %2258 = vmatpush1.bf16.msra.mxu0 %v1747
  %2259 = vmatprep.subr.bf16.mxu0 %v1741
  %2260 = vmatpush1.bf16.msra.mxu0 %v1740
  %2261 = vmatprep.subr.bf16.mxu0 %v1734
  %2262 = vmatpush1.bf16.msra.mxu0 %v1733
  %2263 = vmatprep.subr.bf16.mxu0 %v1727
  %2264 = vmatpush1.bf16.msra.mxu0 %v1726
  %2265 = vmatprep.subr.bf16.mxu0 %v1720
  %2266 = vmatpush1.bf16.msra.mxu0 %v1719
  %2267 = vmatprep.subr.bf16.mxu0 %v1825
  %2268 = vmatpush2.bf16.msra.mxu0 %v1824
  %2269 = vmatprep.subr.bf16.mxu0 %v1818
  %2270 = vmatpush2.bf16.msra.mxu0 %v1817
  %2271 = vmatprep.subr.bf16.mxu0 %v1811
  %2272 = vmatpush2.bf16.msra.mxu0 %v1810
  %2273 = vmatprep.subr.bf16.mxu0 %v1804
  %2274 = vmatpush2.bf16.msra.mxu0 %v1803
  %2275 = vmatprep.subr.bf16.mxu0 %v1797
  %2276 = vmatpush2.bf16.msra.mxu0 %v1796
  %2277 = vmatprep.subr.bf16.mxu0 %v1790
  %2278 = vmatpush2.bf16.msra.mxu0 %v1789
  %2279 = vmatprep.subr.bf16.mxu0 %v1783
  %2280 = vmatpush2.bf16.msra.mxu0 %v1782
  %2281 = vmatprep.subr.bf16.mxu0 %v1776
  %2282 = vmatpush2.bf16.msra.mxu0 %v1775
  %2283 = vmatprep.mubr.bf16.mxu0 %v717
  %2284 = vmatmul.mubr.bf16.gmra.mxu0 %v716
  %v2285 = vpop.f32.mrf.mxu0
  %v2286 = vadd.f32 %v989, %v2285
  %v2287 = vpop.f32.mrf.mxu0
  %v2288 = vadd.f32 %v993, %v2287
  %v2289 = vpop.f32.mrf.mxu0
  %v2290 = vadd.f32 %v989, %v2289
  %v2291 = vpop.f32.mrf.mxu0
  %v2292 = vadd.f32 %v993, %v2291
  %2293 = vdwg.mxu0
  %2294 = vmatprep.subr.bf16.mxu0 %v1881
  %2295 = vmatpush1.bf16.msra.mxu0 %v1880
  %2296 = vmatprep.subr.bf16.mxu0 %v1874
  %2297 = vmatpush1.bf16.msra.mxu0 %v1873
  %2298 = vmatprep.subr.bf16.mxu0 %v1867
  %2299 = vmatpush1.bf16.msra.mxu0 %v1866
  %2300 = vmatprep.subr.bf16.mxu0 %v1860
  %2301 = vmatpush1.bf16.msra.mxu0 %v1859
  %2302 = vmatprep.subr.bf16.mxu0 %v1853
  %2303 = vmatpush1.bf16.msra.mxu0 %v1852
  %2304 = vmatprep.subr.bf16.mxu0 %v1846
  %2305 = vmatpush1.bf16.msra.mxu0 %v1845
  %2306 = vmatprep.subr.bf16.mxu0 %v1839
  %2307 = vmatpush1.bf16.msra.mxu0 %v1838
  %2308 = vmatprep.subr.bf16.mxu0 %v1832
  %2309 = vmatpush1.bf16.msra.mxu0 %v1831
  %2310 = vmatprep.subr.bf16.mxu0 %v1937
  %2311 = vmatpush2.bf16.msra.mxu0 %v1936
  %2312 = vmatprep.subr.bf16.mxu0 %v1930
  %2313 = vmatpush2.bf16.msra.mxu0 %v1929
  %2314 = vmatprep.subr.bf16.mxu0 %v1923
  %2315 = vmatpush2.bf16.msra.mxu0 %v1922
  %2316 = vmatprep.subr.bf16.mxu0 %v1916
  %2317 = vmatpush2.bf16.msra.mxu0 %v1915
  %2318 = vmatprep.subr.bf16.mxu0 %v1909
  %2319 = vmatpush2.bf16.msra.mxu0 %v1908
  %2320 = vmatprep.subr.bf16.mxu0 %v1902
  %2321 = vmatpush2.bf16.msra.mxu0 %v1901
  %2322 = vmatprep.subr.bf16.mxu0 %v1895
  %2323 = vmatpush2.bf16.msra.mxu0 %v1894
  %2324 = vmatprep.subr.bf16.mxu0 %v1888
  %2325 = vmatpush2.bf16.msra.mxu0 %v1887
  %2326 = vmatprep.mubr.bf16.mxu0 %v719
  %2327 = vmatmul.mubr.bf16.gmra.mxu0 %v718
  %v2328 = vpop.f32.mrf.mxu0
  %v2329 = vadd.f32 %v2286, %v2328
  %v2330 = vpop.f32.mrf.mxu0
  %v2331 = vadd.f32 %v2288, %v2330
  %v2332 = vpop.f32.mrf.mxu0
  %v2333 = vadd.f32 %v2290, %v2332
  %v2334 = vpop.f32.mrf.mxu0
  %v2335 = vadd.f32 %v2292, %v2334
  %2336 = vdwg.mxu0
  %2337 = vmatprep.subr.bf16.mxu0 %v1771
  %2338 = vmatpush1.bf16.msra.mxu0 %v1770
  %2339 = vmatprep.subr.bf16.mxu0 %v1764
  %2340 = vmatpush1.bf16.msra.mxu0 %v1763
  %2341 = vmatprep.subr.bf16.mxu0 %v1757
  %2342 = vmatpush1.bf16.msra.mxu0 %v1756
  %2343 = vmatprep.subr.bf16.mxu0 %v1750
  %2344 = vmatpush1.bf16.msra.mxu0 %v1749
  %2345 = vmatprep.subr.bf16.mxu0 %v1743
  %2346 = vmatpush1.bf16.msra.mxu0 %v1742
  %2347 = vmatprep.subr.bf16.mxu0 %v1736
  %2348 = vmatpush1.bf16.msra.mxu0 %v1735
  %2349 = vmatprep.subr.bf16.mxu0 %v1729
  %2350 = vmatpush1.bf16.msra.mxu0 %v1728
  %2351 = vmatprep.subr.bf16.mxu0 %v1722
  %2352 = vmatpush1.bf16.msra.mxu0 %v1721
  %2353 = vmatprep.subr.bf16.mxu0 %v1827
  %2354 = vmatpush2.bf16.msra.mxu0 %v1826
  %2355 = vmatprep.subr.bf16.mxu0 %v1820
  %2356 = vmatpush2.bf16.msra.mxu0 %v1819
  %2357 = vmatprep.subr.bf16.mxu0 %v1813
  %2358 = vmatpush2.bf16.msra.mxu0 %v1812
  %2359 = vmatprep.subr.bf16.mxu0 %v1806
  %2360 = vmatpush2.bf16.msra.mxu0 %v1805
  %2361 = vmatprep.subr.bf16.mxu0 %v1799
  %2362 = vmatpush2.bf16.msra.mxu0 %v1798
  %2363 = vmatprep.subr.bf16.mxu0 %v1792
  %2364 = vmatpush2.bf16.msra.mxu0 %v1791
  %2365 = vmatprep.subr.bf16.mxu0 %v1785
  %2366 = vmatpush2.bf16.msra.mxu0 %v1784
  %2367 = vmatprep.subr.bf16.mxu0 %v1778
  %2368 = vmatpush2.bf16.msra.mxu0 %v1777
  %2369 = vmatprep.mubr.bf16.mxu0 %v717
  %2370 = vmatmul.mubr.bf16.gmra.mxu0 %v716
  %v2371 = vpop.f32.mrf.mxu0
  %v2372 = vadd.f32 %v997, %v2371
  %v2373 = vpop.f32.mrf.mxu0
  %v2374 = vadd.f32 %v1001, %v2373
  %v2375 = vpop.f32.mrf.mxu0
  %v2376 = vadd.f32 %v997, %v2375
  %v2377 = vpop.f32.mrf.mxu0
  %v2378 = vadd.f32 %v1001, %v2377
  %2379 = vdwg.mxu0
  %2380 = vmatprep.subr.bf16.mxu0 %v1883
  %2381 = vmatpush1.bf16.msra.mxu0 %v1882
  %2382 = vmatprep.subr.bf16.mxu0 %v1876
  %2383 = vmatpush1.bf16.msra.mxu0 %v1875
  %2384 = vmatprep.subr.bf16.mxu0 %v1869
  %2385 = vmatpush1.bf16.msra.mxu0 %v1868
  %2386 = vmatprep.subr.bf16.mxu0 %v1862
  %2387 = vmatpush1.bf16.msra.mxu0 %v1861
  %2388 = vmatprep.subr.bf16.mxu0 %v1855
  %2389 = vmatpush1.bf16.msra.mxu0 %v1854
  %2390 = vmatprep.subr.bf16.mxu0 %v1848
  %2391 = vmatpush1.bf16.msra.mxu0 %v1847
  %2392 = vmatprep.subr.bf16.mxu0 %v1841
  %2393 = vmatpush1.bf16.msra.mxu0 %v1840
  %2394 = vmatprep.subr.bf16.mxu0 %v1834
  %2395 = vmatpush1.bf16.msra.mxu0 %v1833
  %2396 = vmatprep.subr.bf16.mxu0 %v1939
  %2397 = vmatpush2.bf16.msra.mxu0 %v1938
  %2398 = vmatprep.subr.bf16.mxu0 %v1932
  %2399 = vmatpush2.bf16.msra.mxu0 %v1931
  %2400 = vmatprep.subr.bf16.mxu0 %v1925
  %2401 = vmatpush2.bf16.msra.mxu0 %v1924
  %2402 = vmatprep.subr.bf16.mxu0 %v1918
  %2403 = vmatpush2.bf16.msra.mxu0 %v1917
  %2404 = vmatprep.subr.bf16.mxu0 %v1911
  %2405 = vmatpush2.bf16.msra.mxu0 %v1910
  %2406 = vmatprep.subr.bf16.mxu0 %v1904
  %2407 = vmatpush2.bf16.msra.mxu0 %v1903
  %2408 = vmatprep.subr.bf16.mxu0 %v1897
  %2409 = vmatpush2.bf16.msra.mxu0 %v1896
  %2410 = vmatprep.subr.bf16.mxu0 %v1890
  %2411 = vmatpush2.bf16.msra.mxu0 %v1889
  %2412 = vmatprep.mubr.bf16.mxu0 %v719
  %2413 = vmatmul.mubr.bf16.gmra.mxu0 %v718
  %v2414 = vpop.f32.mrf.mxu0
  %v2415 = vadd.f32 %v2372, %v2414
  %v2416 = vpop.f32.mrf.mxu0
  %v2417 = vadd.f32 %v2374, %v2416
  %v2418 = vpop.f32.mrf.mxu0
  %v2419 = vadd.f32 %v2376, %v2418
  %v2420 = vpop.f32.mrf.mxu0
  %v2421 = vadd.f32 %v2378, %v2420
  %2422 = vdwg.mxu0
  %2423 = vmatprep.subr.bf16.mxu0 0
  %2424 = vmatpush1.bf16.msra.mxu0 %v1772
  %2425 = vmatprep.subr.bf16.mxu0 0
  %2426 = vmatpush1.bf16.msra.mxu0 %v1765
  %2427 = vmatprep.subr.bf16.mxu0 0
  %2428 = vmatpush1.bf16.msra.mxu0 %v1758
  %2429 = vmatprep.subr.bf16.mxu0 0
  %2430 = vmatpush1.bf16.msra.mxu0 %v1751
  %2431 = vmatprep.subr.bf16.mxu0 0
  %2432 = vmatpush1.bf16.msra.mxu0 %v1744
  %2433 = vmatprep.subr.bf16.mxu0 0
  %2434 = vmatpush1.bf16.msra.mxu0 %v1737
  %2435 = vmatprep.subr.bf16.mxu0 0
  %2436 = vmatpush1.bf16.msra.mxu0 %v1730
  %2437 = vmatprep.subr.bf16.mxu0 0
  %2438 = vmatpush1.bf16.msra.mxu0 %v1723
  %2439 = vmatprep.subr.bf16.mxu0 0
  %2440 = vmatpush2.bf16.msra.mxu0 %v1828
  %2441 = vmatprep.subr.bf16.mxu0 0
  %2442 = vmatpush2.bf16.msra.mxu0 %v1821
  %2443 = vmatprep.subr.bf16.mxu0 0
  %2444 = vmatpush2.bf16.msra.mxu0 %v1814
  %2445 = vmatprep.subr.bf16.mxu0 0
  %2446 = vmatpush2.bf16.msra.mxu0 %v1807
  %2447 = vmatprep.subr.bf16.mxu0 0
  %2448 = vmatpush2.bf16.msra.mxu0 %v1800
  %2449 = vmatprep.subr.bf16.mxu0 0
  %2450 = vmatpush2.bf16.msra.mxu0 %v1793
  %2451 = vmatprep.subr.bf16.mxu0 0
  %2452 = vmatpush2.bf16.msra.mxu0 %v1786
  %2453 = vmatprep.subr.bf16.mxu0 0
  %2454 = vmatpush2.bf16.msra.mxu0 %v1779
  %2455 = vmatprep.mubr.bf16.mxu0 %v717
  %2456 = vmatmul.mubr.bf16.gmra.mxu0 %v716
  %v2457 = vpop.f32.mrf.mxu0
  %v2458 = vadd.f32 %v1005, %v2457
  %v2459 = vpop.f32.mrf.mxu0
  %v2460 = vpop.f32.mrf.mxu0
  %v2461 = vadd.f32 %v1005, %v2460
  %v2462 = vpop.f32.mrf.mxu0
  %2463 = vdwg.mxu0
  %2464 = vmatprep.subr.bf16.mxu0 0
  %2465 = vmatpush1.bf16.msra.mxu0 %v1884
  %2466 = vmatprep.subr.bf16.mxu0 0
  %2467 = vmatpush1.bf16.msra.mxu0 %v1877
  %2468 = vmatprep.subr.bf16.mxu0 0
  %2469 = vmatpush1.bf16.msra.mxu0 %v1870
  %2470 = vmatprep.subr.bf16.mxu0 0
  %2471 = vmatpush1.bf16.msra.mxu0 %v1863
  %2472 = vmatprep.subr.bf16.mxu0 0
  %2473 = vmatpush1.bf16.msra.mxu0 %v1856
  %2474 = vmatprep.subr.bf16.mxu0 0
  %2475 = vmatpush1.bf16.msra.mxu0 %v1849
  %2476 = vmatprep.subr.bf16.mxu0 0
  %2477 = vmatpush1.bf16.msra.mxu0 %v1842
  %2478 = vmatprep.subr.bf16.mxu0 0
  %2479 = vmatpush1.bf16.msra.mxu0 %v1835
  %2480 = vmatprep.subr.bf16.mxu0 0
  %2481 = vmatpush2.bf16.msra.mxu0 %v1940
  %2482 = vmatprep.subr.bf16.mxu0 0
  %2483 = vmatpush2.bf16.msra.mxu0 %v1933
  %2484 = vmatprep.subr.bf16.mxu0 0
  %2485 = vmatpush2.bf16.msra.mxu0 %v1926
  %2486 = vmatprep.subr.bf16.mxu0 0
  %2487 = vmatpush2.bf16.msra.mxu0 %v1919
  %2488 = vmatprep.subr.bf16.mxu0 0
  %2489 = vmatpush2.bf16.msra.mxu0 %v1912
  %2490 = vmatprep.subr.bf16.mxu0 0
  %2491 = vmatpush2.bf16.msra.mxu0 %v1905
  %2492 = vmatprep.subr.bf16.mxu0 0
  %2493 = vmatpush2.bf16.msra.mxu0 %v1898
  %2494 = vmatprep.subr.bf16.mxu0 0
  %2495 = vmatpush2.bf16.msra.mxu0 %v1891
  %2496 = vmatprep.mubr.bf16.mxu0 %v719
  %2497 = vmatmul.mubr.bf16.gmra.mxu0 %v718
  %v2498 = vpop.f32.mrf.mxu0
  %v2499 = vadd.f32 %v2458, %v2498
  %v2500 = vpop.f32.mrf.mxu0
  %v2501 = vpop.f32.mrf.mxu0
  %v2502 = vadd.f32 %v2461, %v2501
  %v2503 = vpop.f32.mrf.mxu0
  %2504 = vdwg.mxu0
  %v2505 = vtanh.pop %v2243
  %v2506 = vtanh.pop %v2245
  %v2507 = vtanh.pop %v2329
  %v2508 = vtanh.pop %v2331
  %v2509 = vtanh.pop %v2415
  %v2510 = vtanh.pop %v2417
  %v2511 = vtanh.pop %v2499
  %v2512 = vtanh.pop %v2247
  %v2513 = vtanh.pop %v2249
  %v2514 = vtanh.pop %v2333
  %v2515 = vtanh.pop %v2335
  %v2516 = vtanh.pop %v2419
  %v2517 = vtanh.pop %v2421
  %v2518 = vtanh.pop %v2502
  %v2519 = vpack.c.bf16 %v2512, %v2505
  %v2520 = vpack.c.bf16 %v2513, %v2506
  %v2521 = vpack.c.bf16 %v2514, %v2507
  %v2522 = vpack.c.bf16 %v2515, %v2508
  %v2523 = vpack.c.bf16 %v2516, %v2509
  %v2524 = vpack.c.bf16 %v2517, %v2510
  %v2525 = vpack.c.bf16 %v2518, %v2511
  %v2533 = vunpack.c.l.b16 %v2519
  %v2534 = vunpack.c.l.b16 %v2520
  %v2535 = vunpack.c.l.b16 %v2521
  %v2536 = vunpack.c.l.b16 %v2522
  %v2537 = vunpack.c.l.b16 %v2523
  %v2538 = vunpack.c.l.b16 %v2524
  %v2539 = vunpack.c.l.b16 %v2525
  %v2540 = vunpack.c.h.b16 %v2519
  %v2541 = vunpack.c.h.b16 %v2520
  %v2542 = vunpack.c.h.b16 %v2521
  %v2543 = vunpack.c.h.b16 %v2522
  %v2544 = vunpack.c.h.b16 %v2523
  %v2545 = vunpack.c.h.b16 %v2524
  %v2546 = vunpack.c.h.b16 %v2525
  %v2547 = vpack.c.b16 %v2534, %v2533
  %v2548 = vpack.c.b16 %v2536, %v2535
  %v2549 = vpack.c.b16 %v2538, %v2537
  %v2550 = vpack.c.b16 %v2539, %v2539
  %v2551 = vpack.c.b16 %v2541, %v2540
  %v2552 = vpack.c.b16 %v2543, %v2542
  %v2553 = vpack.c.b16 %v2545, %v2544
  %v2554 = vpack.c.b16 %v2546, %v2546
  %2563 = vst [vmem:[%s7] sm:$0xff] %v2547
  %2564 = vst [vmem:[%s7 + $0x8] sm:$0xff] %v2548
  %2565 = vst [vmem:[%s7 + $0x10] sm:$0xff] %v2549
  %vm2566 = vcmask 125952
  %2567 = vst.msk [vmem:[%s7 + $0x18] sm:$0xf] %vm2566, %v2550
  %2568 = vst [vmem:[%s7 + $0x1c] sm:$0xff] %v2551
  %2569 = vst [vmem:[%s7 + $0x24] sm:$0xff] %v2552
  %2570 = vst [vmem:[%s7 + $0x2c] sm:$0xff] %v2553
  %2571 = vst.msk [vmem:[%s7 + $0x34] sm:$0xf] %vm2566, %v2554
  // Predicated region
  $region30: #{generator_forward.1} parent=0 // pred_check
    _
  $region31: #{generator_forward.1} parent=0 // pred_check_branch
    %2573 = sbr.rel (0) target = $region33
  $region32: #{generator_forward.1} parent=0 // pred_region
    _
  $region33: #{generator_forward.1} parent=0 // pred_fallthru
    _
  // Predicated region
  $region34: #{generator_forward.1} parent=0 // pred_check
    _
  $region35: #{generator_forward.1} parent=0 // pred_check_branch
    %2575 = sbr.rel (0) target = $region37
  $region36: #{generator_forward.1} parent=0 // pred_region
    _
  $region37: #{generator_forward.1} parent=0 // pred_fallthru
    _

</llo_original>
